<compile_context>
chip_gen: v7x
topology: tpu7x:2x2x1
jax: 0.10.0
libtpu: 0.0.40
codegen_flags: <defaults>
</compile_context>

<pallas_src>
import functools

import numpy as np
import jax
import jax.numpy as jnp
from jax import lax
from jax.experimental import pallas as pl
from jax.experimental.pallas import tpu as pltpu


def _round_up(x, m):
    return (x + m - 1) // m * m


def _vmem_capacity_bytes():
    try:
        return int(pltpu.get_tpu_info().vmem_capacity_bytes)
    except Exception:
        return 64 << 20          # conservative default (v7x per-TensorCore)


def _pick_batch_tile(B, bt_max, prefer_even_grid=True):
    """Largest divisor of B that is <= bt_max, preferring an even grid length."""
    bt_max = max(1, min(int(bt_max), B))
    best, best_even = 1, None
    for d in range(1, bt_max + 1):
        if B % d == 0:
            best = d
            if (B // d) % 2 == 0:
                best_even = d
    if prefer_even_grid and best_even is not None:
        return best_even
    return best


@functools.lru_cache(maxsize=None)
def _dft_tables(N, M, n_pad, mp, dtype_name):
    """Forward table F (n_pad, 2*mp) = [cos | -sin] and inverse table G (2*mp, n_pad).

    Built once per (N, M, padding, dtype) and cached on device (review item: do
    not rebuild / re-upload the tables on every forward call).
    """
    dt = np.dtype(dtype_name)
    n = np.arange(N, dtype=np.float64)
    k = np.arange(M, dtype=np.float64)
    ang = 2.0 * np.pi * np.outer(n, k) / N                 # (N, M)

    F = np.zeros((n_pad, 2 * mp), np.float64)
    F[:N, :M] = np.cos(ang)
    F[:N, mp:mp + M] = -np.sin(ang)

    coef = np.full((M,), 2.0 / N)
    coef[0] = 1.0 / N
    nyquist = (N % 2 == 0) and (M == N // 2 + 1)
    if nyquist:
        coef[-1] = 1.0 / N
        F[:, mp + N // 2] = 0.0                            # sin(pi*n) is exactly 0

    G = np.zeros((2 * mp, n_pad), np.float64)
    G[:M, :N] = coef[:, None] * np.cos(ang.T)
    G[mp:mp + M, :N] = -coef[:, None] * np.sin(ang.T)
    if nyquist:
        G[mp + N // 2, :] = 0.0                            # irfft ignores Nyquist imag

    return jnp.asarray(F, dt), jnp.asarray(G, dt)


def _spectral_conv1d_kernel(x_ref, f_ref, wr_ref, wi_ref, g_ref, o_ref,
                            xf_ref, of_ref, *, cin, mp, unroll):
    """One batch block.

    x_ref : (bt*Cin_p, Np)       batch-folded, channel-padded input rows (compute dtype)
    f_ref : (Np, 2*mp)           forward DFT table [cos | -sin]         (compute dtype)
    wr_ref: (Cin_p, Cout_p, mp)  real part of weights (zero padded, f32)
    wi_ref: (Cin_p, Cout_p, mp)  imag part of weights (zero padded, f32)
    g_ref : (2*mp, Np)           inverse DFT table [[coef*cos],[-coef*sin]] (compute dtype)
    o_ref : (bt*Cout_p, Np)      batch-folded, channel-padded output rows (f32)
    xf_ref: (bt*Cin_p, 2*mp)     VMEM scratch: forward spectrum (f32)
    of_ref: (bt*Cout_p, 2*mp)    VMEM scratch: mixed spectrum (compute dtype)
    """
    cin_p, cout_p, _ = wr_ref.shape
    bt = x_ref.shape[0] // cin_p

    # (1) Truncated rfft of every (batch, channel) row in ONE MXU matmul
    #     (bf16 x bf16 -> f32 accumulate on the default path).
    xf_ref[...] = jnp.dot(x_ref[...], f_ref[...],
                          preferred_element_type=jnp.float32)

    # (2) Complex per-mode channel mixing (VPU, f32 accumulation).  fori_loops
    #     plus VMEM staging keep vreg pressure bounded for large Cin/Cout/bt.
    def mix_batch(b, carry):
        def mix_in(i, acc):
            o_r, o_i = acc
            row = b * cin_p + i
            xrow = xf_ref[pl.ds(row, 1), :]              # (1, 2*mp) f32
            xr = xrow[:, :mp]
            xi = xrow[:, mp:]
            wr = wr_ref[i]                               # (Cout_p, mp) f32
            wi = wi_ref[i]
            return (o_r + xr * wr - xi * wi,
                    o_i + xr * wi + xi * wr)

        zero = jnp.zeros((cout_p, mp), jnp.float32)
        o_r, o_i = lax.fori_loop(0, cin, mix_in, (zero, zero), unroll=unroll)

        out_row = pl.multiple_of(b * cout_p, 8)          # sublane-aligned store
        of_ref[pl.ds(out_row, cout_p), :] = jnp.concatenate(
            [o_r, o_i], axis=-1).astype(of_ref.dtype)
        return carry

    lax.fori_loop(0, bt, mix_batch, 0)

    # (3) irfft of the zero-padded spectrum for the whole block in ONE matmul.
    o_ref[...] = jnp.dot(of_ref[...], g_ref[...],
                         preferred_element_type=jnp.float32).astype(o_ref.dtype)


def spectral_conv1d(x, w_real, w_imag, *, compute_dtype=jnp.bfloat16,
                    batch_tile=None):
    """x: (B, Cin, N) f32; w_real/w_imag: (Cin, Cout, modes1) f32 -> (B, Cout, N) f32."""
    B, Cin, N = x.shape
    Cin_w, Cout, M = w_real.shape
    assert Cin == Cin_w and w_imag.shape == w_real.shape
    assert M <= N // 2 + 1

    cdtype = np.dtype(compute_dtype)
    cb = cdtype.itemsize

    cin_p = _round_up(Cin, 8)        # sublane-aligned channel padding
    cout_p = _round_up(Cout, 8)
    mp = _round_up(M, 64)            # [Re|Im] => 2*mp is always a multiple of 128
    n_pad = _round_up(N, 128)        # lane-dense output stores / dense contractions

    # -------- generation-aware VMEM budgeting (v5e/v6e: 128 MiB, v7x: 64 MiB) -----
    budget = int(_vmem_capacity_bytes() * 0.75)          # headroom for compiler scratch
    table_bytes = 2 * n_pad * 2 * mp * cb                # F + G (one buffer each)
    weight_bytes = 2 * cin_p * cout_p * mp * 4           # wr + wi (f32)
    fixed = 2 * (table_bytes + weight_bytes)             # worst case: double buffered
    per_b = (2 * cin_p * n_pad * cb + 2 * cout_p * n_pad * 4   # dbl-buffered in/out
             + cin_p * 2 * mp * 4 + cout_p * 2 * mp * cb)      # spectrum scratches

    if batch_tile is None:
        avail = max(per_b, budget // 2 - fixed)
        bt_max = max(1, avail // per_b)
        if B > 1:
            bt_max = min(bt_max, B // 2)   # keep >= 2 grid steps (pipelining/megacore)
    else:
        bt_max = max(1, int(batch_tile))
    bt = _pick_batch_tile(B, bt_max, prefer_even_grid=(batch_tile is None))

    # -------- cached DFT tables, (zero-)padded operands --------------------------
    f_tab, g_tab = _dft_tables(N, M, n_pad, mp, cdtype.name)

    if Cin == cin_p and N == n_pad:
        x_p = x.reshape(B * Cin, N).astype(cdtype)               # no padding copy
    else:
        x_p = jnp.zeros((B, cin_p, n_pad), cdtype).at[:, :Cin, :N].set(x.astype(cdtype))
        x_p = x_p.reshape(B * cin_p, n_pad)

    if (Cin, Cout, M) == (cin_p, cout_p, mp):
        wr_p = w_real.astype(jnp.float32)
        wi_p = w_imag.astype(jnp.float32)
    else:
        wr_p = jnp.zeros((cin_p, cout_p, mp), jnp.float32).at[:Cin, :Cout, :M].set(w_real)
        wi_p = jnp.zeros((cin_p, cout_p, mp), jnp.float32).at[:Cin, :Cout, :M].set(w_imag)

    flops = int(2 * B * cin_p * n_pad * 2 * mp        # forward DFT
                + 2 * B * cout_p * 2 * mp * n_pad     # inverse DFT
                + 8 * B * Cin * cout_p * mp)          # complex mixing (VPU)
    bytes_accessed = int(B * cin_p * n_pad * cb + 4 * B * cout_p * n_pad
                         + table_bytes + weight_bytes)
    est = fixed + bt * per_b
    vmem_limit = int(min(budget, max(2 * est, 16 << 20)))

    kernel = functools.partial(_spectral_conv1d_kernel, cin=Cin, mp=mp,
                               unroll=min(8, max(1, Cin)))

    def _run(single_buffer_tables):
        def const_spec(shape, index_map):
            # Constant inputs only need one VMEM buffer (DMA'd once).
            if single_buffer_tables:
                return pl.BlockSpec(shape, index_map, pipeline_mode=pl.Buffered(1))
            return pl.BlockSpec(shape, index_map)

        grid_spec = pltpu.PrefetchScalarGridSpec(
            num_scalar_prefetch=0,
            grid=(B // bt,),
            in_specs=[
                pl.BlockSpec((bt * cin_p, n_pad), lambda b: (b, 0)),       # x block
                const_spec((n_pad, 2 * mp), lambda b: (0, 0)),             # F (resident)
                const_spec((cin_p, cout_p, mp), lambda b: (0, 0, 0)),      # wr
                const_spec((cin_p, cout_p, mp), lambda b: (0, 0, 0)),      # wi
                const_spec((2 * mp, n_pad), lambda b: (0, 0)),             # G (resident)
            ],
            out_specs=pl.BlockSpec((bt * cout_p, n_pad), lambda b: (b, 0)),
            scratch_shapes=[pltpu.VMEM((bt * cin_p, 2 * mp), jnp.float32),
                            pltpu.VMEM((bt * cout_p, 2 * mp), cdtype)],
        )
        return pl.pallas_call(
            kernel,
            out_shape=jax.ShapeDtypeStruct((B * cout_p, n_pad), jnp.float32),
            grid_spec=grid_spec,
            compiler_params=pltpu.CompilerParams(
                dimension_semantics=("parallel",),
                vmem_limit_bytes=vmem_limit),
            cost_estimate=pl.CostEstimate(flops=flops, transcendentals=0,
                                          bytes_accessed=bytes_accessed),
        )(x_p, f_tab, wr_p, wi_p, g_tab)

    try:
        out2 = _run(True)          # single-buffered constant tables/weights
    except Exception:
        out2 = _run(False)         # fall back to default double buffering

    out = out2.reshape(B, cout_p, n_pad)
    if cout_p != Cout or n_pad != N:
        out = out[:, :Cout, :N]
    return out


def _reference_numpy(x, w_real, w_imag):
    """Pure numpy re-implementation of the PyTorch forward for verification."""
    x = np.asarray(x, dtype=np.float64)
    w = np.asarray(w_real, np.float64) + 1j * np.asarray(w_imag, np.float64)
    B, Cin, N = x.shape
    _, Cout, M = w.shape
    x_ft = np.fft.rfft(x, axis=-1)
    out_ft = np.zeros((B, Cout, N // 2 + 1), dtype=np.complex128)
    out_ft[:, :, :M] = np.einsum('bix,iox->box', x_ft[:, :, :M], w)
    return np.fft.irfft(out_ft, n=N, axis=-1)


if __name__ == "__main__":
    # Small shapes consistent with the module: in_channels=4, out_channels=4,
    # modes1=5, batch=2, spatial length N=16.
    B, Cin, Cout, N, modes1 = 2, 4, 4, 16, 5

    key = jax.random.PRNGKey(0)
    kx, kwr, kwi = jax.random.split(key, 3)

    x = jax.random.normal(kx, (B, Cin, N), dtype=jnp.float32)

    # weights1 = scale * rand(Cin, Cout, modes1, dtype=cfloat) -> uniform[0,1) real & imag
    scale = 1.0 / (Cin * Cout)
    w_real = scale * jax.random.uniform(kwr, (Cin, Cout, modes1), dtype=jnp.float32)
    w_imag = scale * jax.random.uniform(kwi, (Cin, Cout, modes1), dtype=jnp.float32)

    ref = _reference_numpy(x, w_real, w_imag)

    # Exact (f32 MXU) path: tight tolerance against the float64 reference.
    out_f32 = jax.block_until_ready(
        spectral_conv1d(x, w_real, w_imag, compute_dtype=jnp.float32))
    assert out_f32.shape == (B, Cout, N)
    np.testing.assert_allclose(np.asarray(out_f32), ref, atol=1e-4, rtol=1e-4)

    # Fast (bf16 MXU) default path: bf16-level tolerance.
    out_bf16 = jax.block_until_ready(spectral_conv1d(x, w_real, w_imag))
    assert out_bf16.shape == (B, Cout, N)
    np.testing.assert_allclose(np.asarray(out_bf16), ref, atol=5e-2, rtol=5e-2)

    print("KERNEL_OK")
</pallas_src>

<mosaic_0001>
module attributes {stable_mosaic.version = 11 : i64} {
  func.func @_spectral_conv1d_kernel(%arg0: i32, %arg1: memref<8x128xf32, #tpu.memory_space<vmem>>, %arg2: memref<128x128xf32, #tpu.memory_space<vmem>>, %arg3: memref<8x8x64xf32, #tpu.memory_space<vmem>>, %arg4: memref<8x8x64xf32, #tpu.memory_space<vmem>>, %arg5: memref<128x128xf32, #tpu.memory_space<vmem>>, %arg6: memref<8x128xf32, #tpu.memory_space<vmem>>, %arg7: memref<8x128xf32, #tpu.memory_space<vmem>>, %arg8: memref<8x128xf32, #tpu.memory_space<vmem>>) attributes {dimension_semantics = [#tpu.dimension_semantics<parallel>], iteration_bounds = array<i64: 2>, scalar_prefetch = 0 : i64, scratch_operands = 2 : i64, tpu.core_type = #tpu.core_type<tc>, window_params = [{transform_indices = @transform_0, window_bounds = array<i64: 8, 128>}, {pipeline_mode = #tpu.pipeline_mode<synchronous>, transform_indices = @transform_1, window_bounds = array<i64: 128, 128>}, {pipeline_mode = #tpu.pipeline_mode<synchronous>, transform_indices = @transform_2, window_bounds = array<i64: 8, 8, 64>}, {pipeline_mode = #tpu.pipeline_mode<synchronous>, transform_indices = @transform_3, window_bounds = array<i64: 8, 8, 64>}, {pipeline_mode = #tpu.pipeline_mode<synchronous>, transform_indices = @transform_4, window_bounds = array<i64: 128, 128>}, {transform_indices = @transform_5, window_bounds = array<i64: 8, 128>}]} {
    %c0 = arith.constant 0 : index
    %c0_0 = arith.constant 0 : index
    %0 = vector.load %arg1[%c0, %c0_0] : memref<8x128xf32, #tpu.memory_space<vmem>>, vector<8x128xf32>
    %c0_1 = arith.constant 0 : index
    %c0_2 = arith.constant 0 : index
    %1 = vector.load %arg2[%c0_1, %c0_2] : memref<128x128xf32, #tpu.memory_space<vmem>>, vector<128x128xf32>
    %cst = arith.constant dense<0.000000e+00> : vector<8x128xf32>
    %2 = tpu.matmul %0, %1, %cst {dimension_numbers = #tpu.dot_dimension_numbers<[1], [0], [0], [1], [0, 0, 1, 1], [], []>} : vector<8x128xf32>, vector<128x128xf32>, vector<8x128xf32> -> vector<8x128xf32>
    %c0_3 = arith.constant 0 : index
    %c0_4 = arith.constant 0 : index
    %3 = vector.load %arg7[%c0_3, %c0_4] : memref<8x128xf32, #tpu.memory_space<vmem>>, vector<8x128xf32>
    tpu.vector_store %arg7[%c0_3, %c0_4], %2 {strides = array<i32>} : memref<8x128xf32, #tpu.memory_space<vmem>>, vector<8x128xf32>,
    %c0_i32 = arith.constant 0 : i32
    %cst_5 = arith.constant 0.000000e+00 : f32
    %4 = vector.broadcast %cst_5 : f32 to vector<8x64xf32>
    %c0_i32_6 = arith.constant 0 : i32
    %c8_i32 = arith.constant 8 : i32
    %5 = arith.muli %c0_i32, %c8_i32 : i32
    %6 = arith.addi %5, %c0_i32_6 : i32
    %7 = arith.index_cast %6 : i32 to index
    %c0_7 = arith.constant 0 : index
    %8 = vector.load %arg7[%7, %c0_7] : memref<8x128xf32, #tpu.memory_space<vmem>>, vector<1x128xf32>
    %9 = vector.extract_strided_slice %8 {offsets = [0, 0], sizes = [1, 64], strides = [1, 1]} : vector<1x128xf32> to vector<1x64xf32>
    %10 = vector.extract_strided_slice %8 {offsets = [0, 64], sizes = [1, 64], strides = [1, 1]} : vector<1x128xf32> to vector<1x64xf32>
    %11 = arith.index_cast %c0_i32_6 : i32 to index
    %c0_8 = arith.constant 0 : index
    %c0_9 = arith.constant 0 : index
    %12 = vector.load %arg3[%11, %c0_8, %c0_9] : memref<8x8x64xf32, #tpu.memory_space<vmem>>, vector<1x8x64xf32>
    %13 = vector.shape_cast %12 : vector<1x8x64xf32> to vector<8x64xf32>
    %14 = arith.index_cast %c0_i32_6 : i32 to index
    %c0_10 = arith.constant 0 : index
    %c0_11 = arith.constant 0 : index
    %15 = vector.load %arg4[%14, %c0_10, %c0_11] : memref<8x8x64xf32, #tpu.memory_space<vmem>>, vector<1x8x64xf32>
    %16 = vector.shape_cast %15 : vector<1x8x64xf32> to vector<8x64xf32>
    %17 = vector.broadcast %9 : vector<1x64xf32> to vector<8x64xf32>
    %18 = arith.mulf %17, %13 : vector<8x64xf32>
    %19 = arith.addf %4, %18 : vector<8x64xf32>
    %20 = vector.broadcast %10 : vector<1x64xf32> to vector<8x64xf32>
    %21 = arith.mulf %20, %16 : vector<8x64xf32>
    %22 = arith.subf %19, %21 : vector<8x64xf32>
    %23 = vector.broadcast %9 : vector<1x64xf32> to vector<8x64xf32>
    %24 = arith.mulf %23, %16 : vector<8x64xf32>
    %25 = arith.addf %4, %24 : vector<8x64xf32>
    %26 = vector.broadcast %10 : vector<1x64xf32> to vector<8x64xf32>
    %27 = arith.mulf %26, %13 : vector<8x64xf32>
    %28 = arith.addf %25, %27 : vector<8x64xf32>
    %c1_i32 = arith.constant 1 : i32
    %c8_i32_12 = arith.constant 8 : i32
    %29 = arith.muli %c0_i32, %c8_i32_12 : i32
    %30 = arith.addi %29, %c1_i32 : i32
    %31 = arith.index_cast %30 : i32 to index
    %c0_13 = arith.constant 0 : index
    %32 = vector.load %arg7[%31, %c0_13] : memref<8x128xf32, #tpu.memory_space<vmem>>, vector<1x128xf32>
    %33 = vector.extract_strided_slice %32 {offsets = [0, 0], sizes = [1, 64], strides = [1, 1]} : vector<1x128xf32> to vector<1x64xf32>
    %34 = vector.extract_strided_slice %32 {offsets = [0, 64], sizes = [1, 64], strides = [1, 1]} : vector<1x128xf32> to vector<1x64xf32>
    %35 = arith.index_cast %c1_i32 : i32 to index
    %c0_14 = arith.constant 0 : index
    %c0_15 = arith.constant 0 : index
    %36 = vector.load %arg3[%35, %c0_14, %c0_15] : memref<8x8x64xf32, #tpu.memory_space<vmem>>, vector<1x8x64xf32>
    %37 = vector.shape_cast %36 : vector<1x8x64xf32> to vector<8x64xf32>
    %38 = arith.index_cast %c1_i32 : i32 to index
    %c0_16 = arith.constant 0 : index
    %c0_17 = arith.constant 0 : index
    %39 = vector.load %arg4[%38, %c0_16, %c0_17] : memref<8x8x64xf32, #tpu.memory_space<vmem>>, vector<1x8x64xf32>
    %40 = vector.shape_cast %39 : vector<1x8x64xf32> to vector<8x64xf32>
    %41 = vector.broadcast %33 : vector<1x64xf32> to vector<8x64xf32>
    %42 = arith.mulf %41, %37 : vector<8x64xf32>
    %43 = arith.addf %22, %42 : vector<8x64xf32>
    %44 = vector.broadcast %34 : vector<1x64xf32> to vector<8x64xf32>
    %45 = arith.mulf %44, %40 : vector<8x64xf32>
    %46 = arith.subf %43, %45 : vector<8x64xf32>
    %47 = vector.broadcast %33 : vector<1x64xf32> to vector<8x64xf32>
    %48 = arith.mulf %47, %40 : vector<8x64xf32>
    %49 = arith.addf %28, %48 : vector<8x64xf32>
    %50 = vector.broadcast %34 : vector<1x64xf32> to vector<8x64xf32>
    %51 = arith.mulf %50, %37 : vector<8x64xf32>
    %52 = arith.addf %49, %51 : vector<8x64xf32>
    %c2_i32 = arith.constant 2 : i32
    %c8_i32_18 = arith.constant 8 : i32
    %53 = arith.muli %c0_i32, %c8_i32_18 : i32
    %54 = arith.addi %53, %c2_i32 : i32
    %55 = arith.index_cast %54 : i32 to index
    %c0_19 = arith.constant 0 : index
    %56 = vector.load %arg7[%55, %c0_19] : memref<8x128xf32, #tpu.memory_space<vmem>>, vector<1x128xf32>
    %57 = vector.extract_strided_slice %56 {offsets = [0, 0], sizes = [1, 64], strides = [1, 1]} : vector<1x128xf32> to vector<1x64xf32>
    %58 = vector.extract_strided_slice %56 {offsets = [0, 64], sizes = [1, 64], strides = [1, 1]} : vector<1x128xf32> to vector<1x64xf32>
    %59 = arith.index_cast %c2_i32 : i32 to index
    %c0_20 = arith.constant 0 : index
    %c0_21 = arith.constant 0 : index
    %60 = vector.load %arg3[%59, %c0_20, %c0_21] : memref<8x8x64xf32, #tpu.memory_space<vmem>>, vector<1x8x64xf32>
    %61 = vector.shape_cast %60 : vector<1x8x64xf32> to vector<8x64xf32>
    %62 = arith.index_cast %c2_i32 : i32 to index
    %c0_22 = arith.constant 0 : index
    %c0_23 = arith.constant 0 : index
    %63 = vector.load %arg4[%62, %c0_22, %c0_23] : memref<8x8x64xf32, #tpu.memory_space<vmem>>, vector<1x8x64xf32>
    %64 = vector.shape_cast %63 : vector<1x8x64xf32> to vector<8x64xf32>
    %65 = vector.broadcast %57 : vector<1x64xf32> to vector<8x64xf32>
    %66 = arith.mulf %65, %61 : vector<8x64xf32>
    %67 = arith.addf %46, %66 : vector<8x64xf32>
    %68 = vector.broadcast %58 : vector<1x64xf32> to vector<8x64xf32>
    %69 = arith.mulf %68, %64 : vector<8x64xf32>
    %70 = arith.subf %67, %69 : vector<8x64xf32>
    %71 = vector.broadcast %57 : vector<1x64xf32> to vector<8x64xf32>
    %72 = arith.mulf %71, %64 : vector<8x64xf32>
    %73 = arith.addf %52, %72 : vector<8x64xf32>
    %74 = vector.broadcast %58 : vector<1x64xf32> to vector<8x64xf32>
    %75 = arith.mulf %74, %61 : vector<8x64xf32>
    %76 = arith.addf %73, %75 : vector<8x64xf32>
    %c3_i32 = arith.constant 3 : i32
    %c8_i32_24 = arith.constant 8 : i32
    %77 = arith.muli %c0_i32, %c8_i32_24 : i32
    %78 = arith.addi %77, %c3_i32 : i32
    %79 = arith.index_cast %78 : i32 to index
    %c0_25 = arith.constant 0 : index
    %80 = vector.load %arg7[%79, %c0_25] : memref<8x128xf32, #tpu.memory_space<vmem>>, vector<1x128xf32>
    %81 = vector.extract_strided_slice %80 {offsets = [0, 0], sizes = [1, 64], strides = [1, 1]} : vector<1x128xf32> to vector<1x64xf32>
    %82 = vector.extract_strided_slice %80 {offsets = [0, 64], sizes = [1, 64], strides = [1, 1]} : vector<1x128xf32> to vector<1x64xf32>
    %83 = arith.index_cast %c3_i32 : i32 to index
    %c0_26 = arith.constant 0 : index
    %c0_27 = arith.constant 0 : index
    %84 = vector.load %arg3[%83, %c0_26, %c0_27] : memref<8x8x64xf32, #tpu.memory_space<vmem>>, vector<1x8x64xf32>
    %85 = vector.shape_cast %84 : vector<1x8x64xf32> to vector<8x64xf32>
    %86 = arith.index_cast %c3_i32 : i32 to index
    %c0_28 = arith.constant 0 : index
    %c0_29 = arith.constant 0 : index
    %87 = vector.load %arg4[%86, %c0_28, %c0_29] : memref<8x8x64xf32, #tpu.memory_space<vmem>>, vector<1x8x64xf32>
    %88 = vector.shape_cast %87 : vector<1x8x64xf32> to vector<8x64xf32>
    %89 = vector.broadcast %81 : vector<1x64xf32> to vector<8x64xf32>
    %90 = arith.mulf %89, %85 : vector<8x64xf32>
    %91 = arith.addf %70, %90 : vector<8x64xf32>
    %92 = vector.broadcast %82 : vector<1x64xf32> to vector<8x64xf32>
    %93 = arith.mulf %92, %88 : vector<8x64xf32>
    %94 = arith.subf %91, %93 : vector<8x64xf32>
    %95 = vector.broadcast %81 : vector<1x64xf32> to vector<8x64xf32>
    %96 = arith.mulf %95, %88 : vector<8x64xf32>
    %97 = arith.addf %76, %96 : vector<8x64xf32>
    %98 = vector.broadcast %82 : vector<1x64xf32> to vector<8x64xf32>
    %99 = arith.mulf %98, %85 : vector<8x64xf32>
    %100 = arith.addf %97, %99 : vector<8x64xf32>
    %c4_i32 = arith.constant 4 : i32
    %c8_i32_30 = arith.constant 8 : i32
    %101 = arith.muli %c0_i32, %c8_i32_30 : i32
    %102 = tpu.assume_multiple %101, 8 : i32
    %103 = tpu.concatenate %94, %100 in 1 : vector<8x64xf32>, vector<8x64xf32> -> vector<8x128xf32>
    %104 = arith.index_cast %102 : i32 to index
    %c0_31 = arith.constant 0 : index
    %105 = vector.load %arg8[%104, %c0_31] : memref<8x128xf32, #tpu.memory_space<vmem>>, vector<8x128xf32>
    tpu.vector_store %arg8[%104, %c0_31], %103 {strides = array<i32>} : memref<8x128xf32, #tpu.memory_space<vmem>>, vector<8x128xf32>,
    %c1_i32_32 = arith.constant 1 : i32
    %c0_33 = arith.constant 0 : index
    %c0_34 = arith.constant 0 : index
    %106 = vector.load %arg8[%c0_33, %c0_34] : memref<8x128xf32, #tpu.memory_space<vmem>>, vector<8x128xf32>
    %c0_35 = arith.constant 0 : index
    %c0_36 = arith.constant 0 : index
    %107 = vector.load %arg5[%c0_35, %c0_36] : memref<128x128xf32, #tpu.memory_space<vmem>>, vector<128x128xf32>
    %cst_37 = arith.constant dense<0.000000e+00> : vector<8x128xf32>
    %108 = tpu.matmul %106, %107, %cst_37 {dimension_numbers = #tpu.dot_dimension_numbers<[1], [0], [0], [1], [0, 0, 1, 1], [], []>} : vector<8x128xf32>, vector<128x128xf32>, vector<8x128xf32> -> vector<8x128xf32>
    %c0_38 = arith.constant 0 : index
    %c0_39 = arith.constant 0 : index
    %109 = vector.load %arg6[%c0_38, %c0_39] : memref<8x128xf32, #tpu.memory_space<vmem>>, vector<8x128xf32>
    tpu.vector_store %arg6[%c0_38, %c0_39], %108 {strides = array<i32>} : memref<8x128xf32, #tpu.memory_space<vmem>>, vector<8x128xf32>,
    return
  }
  func.func @transform_0(%arg0: i32) -> (i32, i32) {
    %c0_i32 = arith.constant 0 : i32
    %c0_i32_0 = arith.constant 0 : i32
    return %arg0, %c0_i32 : i32, i32
  }
  func.func @transform_1(%arg0: i32) -> (i32, i32) {
    %c0_i32 = arith.constant 0 : i32
    %c0_i32_0 = arith.constant 0 : i32
    %c0_i32_1 = arith.constant 0 : i32
    return %c0_i32, %c0_i32_0 : i32, i32
  }
  func.func @transform_2(%arg0: i32) -> (i32, i32, i32) {
    %c0_i32 = arith.constant 0 : i32
    %c0_i32_0 = arith.constant 0 : i32
    %c0_i32_1 = arith.constant 0 : i32
    %c0_i32_2 = arith.constant 0 : i32
    return %c0_i32, %c0_i32_0, %c0_i32_1 : i32, i32, i32
  }
  func.func @transform_3(%arg0: i32) -> (i32, i32, i32) {
    %c0_i32 = arith.constant 0 : i32
    %c0_i32_0 = arith.constant 0 : i32
    %c0_i32_1 = arith.constant 0 : i32
    %c0_i32_2 = arith.constant 0 : i32
    return %c0_i32, %c0_i32_0, %c0_i32_1 : i32, i32, i32
  }
  func.func @transform_4(%arg0: i32) -> (i32, i32) {
    %c0_i32 = arith.constant 0 : i32
    %c0_i32_0 = arith.constant 0 : i32
    %c0_i32_1 = arith.constant 0 : i32
    return %c0_i32, %c0_i32_0 : i32, i32
  }
  func.func @transform_5(%arg0: i32) -> (i32, i32) {
    %c0_i32 = arith.constant 0 : i32
    %c0_i32_0 = arith.constant 0 : i32
    return %arg0, %c0_i32 : i32, i32
  }
}

module attributes {stable_mosaic.version = 11 : i64} {
  func.func @_spectral_conv1d_kernel(%arg0: i32, %arg1: memref<8x128xf32, #tpu.memory_space<vmem>>, %arg2: memref<128x128xf32, #tpu.memory_space<vmem>>, %arg3: memref<8x8x64xf32, #tpu.memory_space<vmem>>, %arg4: memref<8x8x64xf32, #tpu.memory_space<vmem>>, %arg5: memref<128x128xf32, #tpu.memory_space<vmem>>, %arg6: memref<8x128xf32, #tpu.memory_space<vmem>>, %arg7: memref<8x128xf32, #tpu.memory_space<vmem>>, %arg8: memref<8x128xf32, #tpu.memory_space<vmem>>) attributes {dimension_semantics = [#tpu.dimension_semantics<parallel>], iteration_bounds = array<i64: 2>, scalar_prefetch = 0 : i64, scratch_operands = 2 : i64, tpu.core_type = #tpu.core_type<tc>, window_params = [{transform_indices = @transform_0, window_bounds = array<i64: 8, 128>}, {pipeline_mode = #tpu.pipeline_mode<synchronous>, transform_indices = @transform_1, window_bounds = array<i64: 128, 128>}, {pipeline_mode = #tpu.pipeline_mode<synchronous>, transform_indices = @transform_2, window_bounds = array<i64: 8, 8, 64>}, {pipeline_mode = #tpu.pipeline_mode<synchronous>, transform_indices = @transform_3, window_bounds = array<i64: 8, 8, 64>}, {pipeline_mode = #tpu.pipeline_mode<synchronous>, transform_indices = @transform_4, window_bounds = array<i64: 128, 128>}, {transform_indices = @transform_5, window_bounds = array<i64: 8, 128>}]} {
    %c0 = arith.constant 0 : index
    %c0_0 = arith.constant 0 : index
    %0 = vector.load %arg1[%c0, %c0_0] : memref<8x128xf32, #tpu.memory_space<vmem>>, vector<8x128xf32>
    %c0_1 = arith.constant 0 : index
    %c0_2 = arith.constant 0 : index
    %1 = vector.load %arg2[%c0_1, %c0_2] : memref<128x128xf32, #tpu.memory_space<vmem>>, vector<128x128xf32>
    %cst = arith.constant dense<0.000000e+00> : vector<8x128xf32>
    %2 = tpu.matmul %0, %1, %cst {dimension_numbers = #tpu.dot_dimension_numbers<[1], [0], [0], [1], [0, 0, 1, 1], [], []>} : vector<8x128xf32>, vector<128x128xf32>, vector<8x128xf32> -> vector<8x128xf32>
    %c0_3 = arith.constant 0 : index
    %c0_4 = arith.constant 0 : index
    %3 = vector.load %arg7[%c0_3, %c0_4] : memref<8x128xf32, #tpu.memory_space<vmem>>, vector<8x128xf32>
    tpu.vector_store %arg7[%c0_3, %c0_4], %2 {strides = array<i32>} : memref<8x128xf32, #tpu.memory_space<vmem>>, vector<8x128xf32>,
    %c0_i32 = arith.constant 0 : i32
    %cst_5 = arith.constant 0.000000e+00 : f32
    %4 = vector.broadcast %cst_5 : f32 to vector<8x64xf32>
    %c0_i32_6 = arith.constant 0 : i32
    %c8_i32 = arith.constant 8 : i32
    %5 = arith.muli %c0_i32, %c8_i32 : i32
    %6 = arith.addi %5, %c0_i32_6 : i32
    %7 = arith.index_cast %6 : i32 to index
    %c0_7 = arith.constant 0 : index
    %8 = vector.load %arg7[%7, %c0_7] : memref<8x128xf32, #tpu.memory_space<vmem>>, vector<1x128xf32>
    %9 = vector.extract_strided_slice %8 {offsets = [0, 0], sizes = [1, 64], strides = [1, 1]} : vector<1x128xf32> to vector<1x64xf32>
    %10 = vector.extract_strided_slice %8 {offsets = [0, 64], sizes = [1, 64], strides = [1, 1]} : vector<1x128xf32> to vector<1x64xf32>
    %11 = arith.index_cast %c0_i32_6 : i32 to index
    %c0_8 = arith.constant 0 : index
    %c0_9 = arith.constant 0 : index
    %12 = vector.load %arg3[%11, %c0_8, %c0_9] : memref<8x8x64xf32, #tpu.memory_space<vmem>>, vector<1x8x64xf32>
    %13 = vector.shape_cast %12 : vector<1x8x64xf32> to vector<8x64xf32>
    %14 = arith.index_cast %c0_i32_6 : i32 to index
    %c0_10 = arith.constant 0 : index
    %c0_11 = arith.constant 0 : index
    %15 = vector.load %arg4[%14, %c0_10, %c0_11] : memref<8x8x64xf32, #tpu.memory_space<vmem>>, vector<1x8x64xf32>
    %16 = vector.shape_cast %15 : vector<1x8x64xf32> to vector<8x64xf32>
    %17 = vector.broadcast %9 : vector<1x64xf32> to vector<8x64xf32>
    %18 = arith.mulf %17, %13 : vector<8x64xf32>
    %19 = arith.addf %4, %18 : vector<8x64xf32>
    %20 = vector.broadcast %10 : vector<1x64xf32> to vector<8x64xf32>
    %21 = arith.mulf %20, %16 : vector<8x64xf32>
    %22 = arith.subf %19, %21 : vector<8x64xf32>
    %23 = vector.broadcast %9 : vector<1x64xf32> to vector<8x64xf32>
    %24 = arith.mulf %23, %16 : vector<8x64xf32>
    %25 = arith.addf %4, %24 : vector<8x64xf32>
    %26 = vector.broadcast %10 : vector<1x64xf32> to vector<8x64xf32>
    %27 = arith.mulf %26, %13 : vector<8x64xf32>
    %28 = arith.addf %25, %27 : vector<8x64xf32>
    %c1_i32 = arith.constant 1 : i32
    %c8_i32_12 = arith.constant 8 : i32
    %29 = arith.muli %c0_i32, %c8_i32_12 : i32
    %30 = arith.addi %29, %c1_i32 : i32
    %31 = arith.index_cast %30 : i32 to index
    %c0_13 = arith.constant 0 : index
    %32 = vector.load %arg7[%31, %c0_13] : memref<8x128xf32, #tpu.memory_space<vmem>>, vector<1x128xf32>
    %33 = vector.extract_strided_slice %32 {offsets = [0, 0], sizes = [1, 64], strides = [1, 1]} : vector<1x128xf32> to vector<1x64xf32>
    %34 = vector.extract_strided_slice %32 {offsets = [0, 64], sizes = [1, 64], strides = [1, 1]} : vector<1x128xf32> to vector<1x64xf32>
    %35 = arith.index_cast %c1_i32 : i32 to index
    %c0_14 = arith.constant 0 : index
    %c0_15 = arith.constant 0 : index
    %36 = vector.load %arg3[%35, %c0_14, %c0_15] : memref<8x8x64xf32, #tpu.memory_space<vmem>>, vector<1x8x64xf32>
    %37 = vector.shape_cast %36 : vector<1x8x64xf32> to vector<8x64xf32>
    %38 = arith.index_cast %c1_i32 : i32 to index
    %c0_16 = arith.constant 0 : index
    %c0_17 = arith.constant 0 : index
    %39 = vector.load %arg4[%38, %c0_16, %c0_17] : memref<8x8x64xf32, #tpu.memory_space<vmem>>, vector<1x8x64xf32>
    %40 = vector.shape_cast %39 : vector<1x8x64xf32> to vector<8x64xf32>
    %41 = vector.broadcast %33 : vector<1x64xf32> to vector<8x64xf32>
    %42 = arith.mulf %41, %37 : vector<8x64xf32>
    %43 = arith.addf %22, %42 : vector<8x64xf32>
    %44 = vector.broadcast %34 : vector<1x64xf32> to vector<8x64xf32>
    %45 = arith.mulf %44, %40 : vector<8x64xf32>
    %46 = arith.subf %43, %45 : vector<8x64xf32>
    %47 = vector.broadcast %33 : vector<1x64xf32> to vector<8x64xf32>
    %48 = arith.mulf %47, %40 : vector<8x64xf32>
    %49 = arith.addf %28, %48 : vector<8x64xf32>
    %50 = vector.broadcast %34 : vector<1x64xf32> to vector<8x64xf32>
    %51 = arith.mulf %50, %37 : vector<8x64xf32>
    %52 = arith.addf %49, %51 : vector<8x64xf32>
    %c2_i32 = arith.constant 2 : i32
    %c8_i32_18 = arith.constant 8 : i32
    %53 = arith.muli %c0_i32, %c8_i32_18 : i32
    %54 = arith.addi %53, %c2_i32 : i32
    %55 = arith.index_cast %54 : i32 to index
    %c0_19 = arith.constant 0 : index
    %56 = vector.load %arg7[%55, %c0_19] : memref<8x128xf32, #tpu.memory_space<vmem>>, vector<1x128xf32>
    %57 = vector.extract_strided_slice %56 {offsets = [0, 0], sizes = [1, 64], strides = [1, 1]} : vector<1x128xf32> to vector<1x64xf32>
    %58 = vector.extract_strided_slice %56 {offsets = [0, 64], sizes = [1, 64], strides = [1, 1]} : vector<1x128xf32> to vector<1x64xf32>
    %59 = arith.index_cast %c2_i32 : i32 to index
    %c0_20 = arith.constant 0 : index
    %c0_21 = arith.constant 0 : index
    %60 = vector.load %arg3[%59, %c0_20, %c0_21] : memref<8x8x64xf32, #tpu.memory_space<vmem>>, vector<1x8x64xf32>
    %61 = vector.shape_cast %60 : vector<1x8x64xf32> to vector<8x64xf32>
    %62 = arith.index_cast %c2_i32 : i32 to index
    %c0_22 = arith.constant 0 : index
    %c0_23 = arith.constant 0 : index
    %63 = vector.load %arg4[%62, %c0_22, %c0_23] : memref<8x8x64xf32, #tpu.memory_space<vmem>>, vector<1x8x64xf32>
    %64 = vector.shape_cast %63 : vector<1x8x64xf32> to vector<8x64xf32>
    %65 = vector.broadcast %57 : vector<1x64xf32> to vector<8x64xf32>
    %66 = arith.mulf %65, %61 : vector<8x64xf32>
    %67 = arith.addf %46, %66 : vector<8x64xf32>
    %68 = vector.broadcast %58 : vector<1x64xf32> to vector<8x64xf32>
    %69 = arith.mulf %68, %64 : vector<8x64xf32>
    %70 = arith.subf %67, %69 : vector<8x64xf32>
    %71 = vector.broadcast %57 : vector<1x64xf32> to vector<8x64xf32>
    %72 = arith.mulf %71, %64 : vector<8x64xf32>
    %73 = arith.addf %52, %72 : vector<8x64xf32>
    %74 = vector.broadcast %58 : vector<1x64xf32> to vector<8x64xf32>
    %75 = arith.mulf %74, %61 : vector<8x64xf32>
    %76 = arith.addf %73, %75 : vector<8x64xf32>
    %c3_i32 = arith.constant 3 : i32
    %c8_i32_24 = arith.constant 8 : i32
    %77 = arith.muli %c0_i32, %c8_i32_24 : i32
    %78 = arith.addi %77, %c3_i32 : i32
    %79 = arith.index_cast %78 : i32 to index
    %c0_25 = arith.constant 0 : index
    %80 = vector.load %arg7[%79, %c0_25] : memref<8x128xf32, #tpu.memory_space<vmem>>, vector<1x128xf32>
    %81 = vector.extract_strided_slice %80 {offsets = [0, 0], sizes = [1, 64], strides = [1, 1]} : vector<1x128xf32> to vector<1x64xf32>
    %82 = vector.extract_strided_slice %80 {offsets = [0, 64], sizes = [1, 64], strides = [1, 1]} : vector<1x128xf32> to vector<1x64xf32>
    %83 = arith.index_cast %c3_i32 : i32 to index
    %c0_26 = arith.constant 0 : index
    %c0_27 = arith.constant 0 : index
    %84 = vector.load %arg3[%83, %c0_26, %c0_27] : memref<8x8x64xf32, #tpu.memory_space<vmem>>, vector<1x8x64xf32>
    %85 = vector.shape_cast %84 : vector<1x8x64xf32> to vector<8x64xf32>
    %86 = arith.index_cast %c3_i32 : i32 to index
    %c0_28 = arith.constant 0 : index
    %c0_29 = arith.constant 0 : index
    %87 = vector.load %arg4[%86, %c0_28, %c0_29] : memref<8x8x64xf32, #tpu.memory_space<vmem>>, vector<1x8x64xf32>
    %88 = vector.shape_cast %87 : vector<1x8x64xf32> to vector<8x64xf32>
    %89 = vector.broadcast %81 : vector<1x64xf32> to vector<8x64xf32>
    %90 = arith.mulf %89, %85 : vector<8x64xf32>
    %91 = arith.addf %70, %90 : vector<8x64xf32>
    %92 = vector.broadcast %82 : vector<1x64xf32> to vector<8x64xf32>
    %93 = arith.mulf %92, %88 : vector<8x64xf32>
    %94 = arith.subf %91, %93 : vector<8x64xf32>
    %95 = vector.broadcast %81 : vector<1x64xf32> to vector<8x64xf32>
    %96 = arith.mulf %95, %88 : vector<8x64xf32>
    %97 = arith.addf %76, %96 : vector<8x64xf32>
    %98 = vector.broadcast %82 : vector<1x64xf32> to vector<8x64xf32>
    %99 = arith.mulf %98, %85 : vector<8x64xf32>
    %100 = arith.addf %97, %99 : vector<8x64xf32>
    %c4_i32 = arith.constant 4 : i32
    %c8_i32_30 = arith.constant 8 : i32
    %101 = arith.muli %c0_i32, %c8_i32_30 : i32
    %102 = tpu.assume_multiple %101, 8 : i32
    %103 = tpu.concatenate %94, %100 in 1 : vector<8x64xf32>, vector<8x64xf32> -> vector<8x128xf32>
    %104 = arith.index_cast %102 : i32 to index
    %c0_31 = arith.constant 0 : index
    %105 = vector.load %arg8[%104, %c0_31] : memref<8x128xf32, #tpu.memory_space<vmem>>, vector<8x128xf32>
    tpu.vector_store %arg8[%104, %c0_31], %103 {strides = array<i32>} : memref<8x128xf32, #tpu.memory_space<vmem>>, vector<8x128xf32>,
    %c1_i32_32 = arith.constant 1 : i32
    %c0_33 = arith.constant 0 : index
    %c0_34 = arith.constant 0 : index
    %106 = vector.load %arg8[%c0_33, %c0_34] : memref<8x128xf32, #tpu.memory_space<vmem>>, vector<8x128xf32>
    %c0_35 = arith.constant 0 : index
    %c0_36 = arith.constant 0 : index
    %107 = vector.load %arg5[%c0_35, %c0_36] : memref<128x128xf32, #tpu.memory_space<vmem>>, vector<128x128xf32>
    %cst_37 = arith.constant dense<0.000000e+00> : vector<8x128xf32>
    %108 = tpu.matmul %106, %107, %cst_37 {dimension_numbers = #tpu.dot_dimension_numbers<[1], [0], [0], [1], [0, 0, 1, 1], [], []>} : vector<8x128xf32>, vector<128x128xf32>, vector<8x128xf32> -> vector<8x128xf32>
    %c0_38 = arith.constant 0 : index
    %c0_39 = arith.constant 0 : index
    %109 = vector.load %arg6[%c0_38, %c0_39] : memref<8x128xf32, #tpu.memory_space<vmem>>, vector<8x128xf32>
    tpu.vector_store %arg6[%c0_38, %c0_39], %108 {strides = array<i32>} : memref<8x128xf32, #tpu.memory_space<vmem>>, vector<8x128xf32>,
    return
  }
  func.func @transform_0(%arg0: i32) -> (i32, i32) {
    %c0_i32 = arith.constant 0 : i32
    %c0_i32_0 = arith.constant 0 : i32
    return %arg0, %c0_i32 : i32, i32
  }
  func.func @transform_1(%arg0: i32) -> (i32, i32) {
    %c0_i32 = arith.constant 0 : i32
    %c0_i32_0 = arith.constant 0 : i32
    %c0_i32_1 = arith.constant 0 : i32
    return %c0_i32, %c0_i32_0 : i32, i32
  }
  func.func @transform_2(%arg0: i32) -> (i32, i32, i32) {
    %c0_i32 = arith.constant 0 : i32
    %c0_i32_0 = arith.constant 0 : i32
    %c0_i32_1 = arith.constant 0 : i32
    %c0_i32_2 = arith.constant 0 : i32
    return %c0_i32, %c0_i32_0, %c0_i32_1 : i32, i32, i32
  }
  func.func @transform_3(%arg0: i32) -> (i32, i32, i32) {
    %c0_i32 = arith.constant 0 : i32
    %c0_i32_0 = arith.constant 0 : i32
    %c0_i32_1 = arith.constant 0 : i32
    %c0_i32_2 = arith.constant 0 : i32
    return %c0_i32, %c0_i32_0, %c0_i32_1 : i32, i32, i32
  }
  func.func @transform_4(%arg0: i32) -> (i32, i32) {
    %c0_i32 = arith.constant 0 : i32
    %c0_i32_0 = arith.constant 0 : i32
    %c0_i32_1 = arith.constant 0 : i32
    return %c0_i32, %c0_i32_0 : i32, i32
  }
  func.func @transform_5(%arg0: i32) -> (i32, i32) {
    %c0_i32 = arith.constant 0 : i32
    %c0_i32_0 = arith.constant 0 : i32
    return %arg0, %c0_i32 : i32, i32
  }
}

</mosaic_0001>

<llo_original>
// kernel: tpu_custom_call.1
$region0: #{tpu_custom_call.1}
  #allocation0 [shape = 'u32[]', space=smem, size = 0x4, offset = 0x4, fixed_abs, tag = 'smem constant byte address 0x4 - core index']
  #allocation1 [shape = 'u32[144,128]{1,0:T(1,128)}', space=vmem, size = 0x12000, scoped, tag = 'internal scratch']
  #allocation2 [shape = 'f32[8,128]{1,0:T(8,128)}', space=vmem, size = 0x1000, scoped, tag = 'scratch operand']
  #allocation3 [shape = 'f32[8,128]{1,0:T(8,128)}', space=vmem, size = 0x1000, scoped, tag = 'scratch operand']
  %s0 = inlined_call_operand.hbm [shape: f32[16,128], index: 0, kind: input, shape index: {}]
  %s1 = inlined_call_operand.hbm [shape: f32[128,128], index: 1, kind: input, shape index: {}]
  %s2 = inlined_call_operand.hbm [shape: f32[8,8,64], index: 2, kind: input, shape index: {}]
  %s3 = inlined_call_operand.hbm [shape: f32[8,8,64], index: 3, kind: input, shape index: {}]
  %s4 = inlined_call_operand.hbm [shape: f32[128,128], index: 4, kind: input, shape index: {}]
  %s5 = inlined_call_operand.hbm [shape: f32[16,128], index: 5, kind: output, shape index: {}]
  %s6 = sld [smem:[#allocation0]]
  $region73: #{tpu_custom_call.1} parent=0
    _
  %s8 = ssub.s32 1, %s6
  %s9 = scalar_select 0, %s8, %s6
  $region1: #{tpu_custom_call.1} parent=0
    #allocation4 [shape = 'u8[8192]{0}', space=vmem, size = 0x2000, scoped, tag = 'input window, operand 0']
    #allocation5 [shape = 's32[2]{0}', space=sflag, size = 0x8, scoped, tag = 'scoped memory for tpu_custom_call.1']
    #allocation6 [shape = 's32[2]{0}', space=sflag, size = 0x8, scoped, tag = 'scoped memory for tpu_custom_call.1']
    #allocation7 [shape = 'u8[65536]{0}', space=vmem, size = 0x10000, scoped, tag = 'input window, operand 1, single buffered']
    #allocation8 [shape = 's32[1]{0}', space=sflag, size = 0x4, scoped, tag = 'scoped memory for tpu_custom_call.1']
    #allocation9 [shape = 'u8[32768]{0}', space=vmem, size = 0x8000, scoped, tag = 'input window, operand 2, single buffered']
    #allocation10 [shape = 'u8[32768]{0}', space=vmem, size = 0x8000, scoped, tag = 'input window, operand 3, single buffered']
    #allocation11 [shape = 's32[1]{0}', space=sflag, size = 0x4, scoped, tag = 'scoped memory for tpu_custom_call.1']
    #allocation12 [shape = 'u8[65536]{0}', space=vmem, size = 0x10000, scoped, tag = 'input window, operand 4, single buffered']
    #allocation13 [shape = 'u8[8192]{0}', space=vmem, size = 0x2000, scoped, tag = 'output window, operand 0']
    %10 = vsyncpa [#allocation5], 0
    %s11 = scalar_lea.sflag [#allocation5], 1
    %12 = vsyncpa %s11, 0
    %13 = vsyncpa [#allocation8], 0
    %14 = vsyncpa [#allocation11], 0
    %15 = vsyncpa [#allocation6], 0
    %s16 = scalar_lea.sflag [#allocation6], 1
    %17 = vsyncpa %s16, 0
    loop: start=0, step=1, limit=4
    $region2: #{tpu_custom_call.1} parent=1 // loop_pre_header
      _
    $region3: #{tpu_custom_call.1} parent=1 // loop_header
      %s19 = sphi 0, %s23
      %p20 = scmp.ge.s32.totalorder %s19, 4
      %s29 = sphi 0, %s31
      %s32 = sphi 0, %s29
      %s33 = sphi 0, %s32
      %s49 = sphi 0, %s33
      %s53 = sphi 0, %s53
      %s55 = sphi 0, %s53
      %s56 = sphi 0, %s55
      %s70 = sphi 0, %s56
      %s74 = sphi 0, %s74
      %s76 = sphi 0, %s74
      %s77 = sphi 0, %s76
      %s91 = sphi 0, %s77
      %s95 = sphi 0, %s95
      %s97 = sphi 0, %s95
      %s98 = sphi 0, %s97
      %s112 = sphi 0, %s98
      %s116 = sphi 0, %s116
      %s118 = sphi 0, %s116
      %s119 = sphi 0, %s118
      %s133 = sphi 0, %s119
      %s139 = sphi 0, %s141
      %s142 = sphi 0, %s139
      %s143 = sphi 0, %s142
      %s159 = sphi 0, %s143
    $region4: #{tpu_custom_call.1} parent=1 // loop_header_branch
      %22 = sbr.rel (%p20) target = $region8
    $region5: #{tpu_custom_call.1} parent=1 // loop_body
      %s24 = ssub.s32 %s19, 1
      %s25 = ssub.s32 %s19, 2
      %s26 = sadd.s32 %s19, 1
      %s27 = ssub.s32 %s19, %s26
      %p28 = scmp.eq.s32.totalorder %s27, 0
      %s30 = sadd.s32 %s29, 1
      %s31 = scalar_select %p28, %s29, %s30
      %p34 = pneg %p28
      %p35 = scmp.eq.s32.totalorder %s19, 1
      %p36 = por %p34, %p35
      %p37 = scmp.ne.s32.totalorder %s29, %s32
      %p38 = scmp.eq.s32.totalorder %s19, 0
      %p39 = por %p37, %p38
      %p40 = scmp.ne.s32.totalorder %s29, %s32
      %p41 = scmp.eq.s32.totalorder %s24, 1
      %p42 = por %p40, %p41
      %p43 = scmp.ne.s32.totalorder %s32, %s33
      %p44 = scmp.eq.s32.totalorder %s24, 0
      %p45 = por %p43, %p44
      %p46 = scmp.ne.s32.totalorder %s32, %s33
      %p47 = scmp.eq.s32.totalorder %s25, 1
      %p48 = por %p46, %p47
      %p50 = scmp.ne.s32.totalorder %s33, %s49
      %p51 = scmp.eq.s32.totalorder %s25, 0
      %p52 = por %p50, %p51
      %s54 = sadd.s32 %s53, 1
      %p57 = scmp.eq.s32.totalorder %s19, 1
      %p58 = scmp.ne.s32.totalorder %s53, %s55
      %p59 = scmp.eq.s32.totalorder %s19, 0
      %p60 = por %p58, %p59
      %p61 = scmp.ne.s32.totalorder %s53, %s55
      %p62 = scmp.eq.s32.totalorder %s24, 1
      %p63 = por %p61, %p62
      %p64 = scmp.ne.s32.totalorder %s55, %s56
      %p65 = scmp.eq.s32.totalorder %s24, 0
      %p66 = por %p64, %p65
      %p67 = scmp.ne.s32.totalorder %s55, %s56
      %p68 = scmp.eq.s32.totalorder %s25, 1
      %p69 = por %p67, %p68
      %p71 = scmp.ne.s32.totalorder %s56, %s70
      %p72 = scmp.eq.s32.totalorder %s25, 0
      %p73 = por %p71, %p72
      %s75 = sadd.s32 %s74, 1
      %p78 = scmp.eq.s32.totalorder %s19, 1
      %p79 = scmp.ne.s32.totalorder %s74, %s76
      %p80 = scmp.eq.s32.totalorder %s19, 0
      %p81 = por %p79, %p80
      %p82 = scmp.ne.s32.totalorder %s74, %s76
      %p83 = scmp.eq.s32.totalorder %s24, 1
      %p84 = por %p82, %p83
      %p85 = scmp.ne.s32.totalorder %s76, %s77
      %p86 = scmp.eq.s32.totalorder %s24, 0
      %p87 = por %p85, %p86
      %p88 = scmp.ne.s32.totalorder %s76, %s77
      %p89 = scmp.eq.s32.totalorder %s25, 1
      %p90 = por %p88, %p89
      %p92 = scmp.ne.s32.totalorder %s77, %s91
      %p93 = scmp.eq.s32.totalorder %s25, 0
      %p94 = por %p92, %p93
      %s96 = sadd.s32 %s95, 1
      %p99 = scmp.eq.s32.totalorder %s19, 1
      %p100 = scmp.ne.s32.totalorder %s95, %s97
      %p101 = scmp.eq.s32.totalorder %s19, 0
      %p102 = por %p100, %p101
      %p103 = scmp.ne.s32.totalorder %s95, %s97
      %p104 = scmp.eq.s32.totalorder %s24, 1
      %p105 = por %p103, %p104
      %p106 = scmp.ne.s32.totalorder %s97, %s98
      %p107 = scmp.eq.s32.totalorder %s24, 0
      %p108 = por %p106, %p107
      %p109 = scmp.ne.s32.totalorder %s97, %s98
      %p110 = scmp.eq.s32.totalorder %s25, 1
      %p111 = por %p109, %p110
      %p113 = scmp.ne.s32.totalorder %s98, %s112
      %p114 = scmp.eq.s32.totalorder %s25, 0
      %p115 = por %p113, %p114
      %s117 = sadd.s32 %s116, 1
      %p120 = scmp.eq.s32.totalorder %s19, 1
      %p121 = scmp.ne.s32.totalorder %s116, %s118
      %p122 = scmp.eq.s32.totalorder %s19, 0
      %p123 = por %p121, %p122
      %p124 = scmp.ne.s32.totalorder %s116, %s118
      %p125 = scmp.eq.s32.totalorder %s24, 1
      %p126 = por %p124, %p125
      %p127 = scmp.ne.s32.totalorder %s118, %s119
      %p128 = scmp.eq.s32.totalorder %s24, 0
      %p129 = por %p127, %p128
      %p130 = scmp.ne.s32.totalorder %s118, %s119
      %p131 = scmp.eq.s32.totalorder %s25, 1
      %p132 = por %p130, %p131
      %p134 = scmp.ne.s32.totalorder %s119, %s133
      %p135 = scmp.eq.s32.totalorder %s25, 0
      %p136 = por %p134, %p135
      %s137 = ssub.s32 %s19, %s26
      %p138 = scmp.eq.s32.totalorder %s137, 0
      %s140 = sadd.s32 %s139, 1
      %s141 = scalar_select %p138, %s139, %s140
      %p144 = pneg %p138
      %p145 = scmp.eq.s32.totalorder %s19, 1
      %p146 = por %p144, %p145
      %p147 = scmp.ne.s32.totalorder %s139, %s142
      %p148 = scmp.eq.s32.totalorder %s19, 0
      %p149 = por %p147, %p148
      %p150 = scmp.ne.s32.totalorder %s139, %s142
      %p151 = scmp.eq.s32.totalorder %s24, 1
      %p152 = por %p150, %p151
      %p153 = scmp.ne.s32.totalorder %s142, %s143
      %p154 = scmp.eq.s32.totalorder %s24, 0
      %p155 = por %p153, %p154
      %p156 = scmp.ne.s32.totalorder %s142, %s143
      %p157 = scmp.eq.s32.totalorder %s25, 1
      %p158 = por %p156, %p157
      %p160 = scmp.ne.s32.totalorder %s143, %s159
      %p161 = scmp.eq.s32.totalorder %s25, 0
      %p162 = por %p160, %p161
      %p163 = scmp.le.s32.totalorder 1, %s19
      %p164 = scmp.lt.s32.totalorder %s19, 3
      %p165 = pnand %p163, %p164
      %p166 = pneg %p165
      // Predicated region
      $region9: #{tpu_custom_call.1} parent=5 // pred_check
        _
      $region10: #{tpu_custom_call.1} parent=5 // pred_check_branch
        %168 = sbr.rel (%p165) target = $region12
      $region11: #{tpu_custom_call.1} parent=5 // pred_region
        %s169 = ssub.s32 %s19, 1
        // Predicated region
        $region13: #{tpu_custom_call.1} parent=11 // pred_check
          %p170 = pneg %p66
        $region14: #{tpu_custom_call.1} parent=11 // pred_check_branch
          %172 = sbr.rel (%p170) target = $region16
        $region15: #{tpu_custom_call.1} parent=11 // pred_region
          %s174 = ssub.s32 2048, 2048
          %175 = vsyncadd [#allocation8], %s174
          %s176 = sshll.u32 [#allocation7], 4
          %s177 = int_to_ptr.vmem [resolvable:$true] %s176
          %182 = dma.hbm_to_vmem [thread:$0]  %s1, 2048, %s177, [#allocation8], 128, 128, 8
        $region16: #{tpu_custom_call.1} parent=11 // pred_fallthru
          _
        // Predicated region
        $region17: #{tpu_custom_call.1} parent=11 // pred_check
          %p183 = pneg %p87
        $region18: #{tpu_custom_call.1} parent=11 // pred_check_branch
          %185 = sbr.rel (%p183) target = $region20
        $region19: #{tpu_custom_call.1} parent=11 // pred_region
          %s187 = ssub.s32 1024, 1024
          %188 = vsyncadd [#allocation8], %s187
          %s189 = sshll.u32 [#allocation9], 4
          %s190 = int_to_ptr.vmem [resolvable:$true] %s189
          %195 = dma.hbm_to_vmem [thread:$0]  %s2, 1024, %s190, [#allocation8], 128, 128, 8
        $region20: #{tpu_custom_call.1} parent=11 // pred_fallthru
          _
        // Predicated region
        $region21: #{tpu_custom_call.1} parent=11 // pred_check
          %p196 = pneg %p108
        $region22: #{tpu_custom_call.1} parent=11 // pred_check_branch
          %198 = sbr.rel (%p196) target = $region24
        $region23: #{tpu_custom_call.1} parent=11 // pred_region
          %s200 = ssub.s32 1024, 1024
          %201 = vsyncadd [#allocation11], %s200
          %s202 = sshll.u32 [#allocation10], 4
          %s203 = int_to_ptr.vmem [resolvable:$true] %s202
          %208 = dma.hbm_to_vmem [thread:$0]  %s3, 1024, %s203, [#allocation11], 128, 128, 8
        $region24: #{tpu_custom_call.1} parent=11 // pred_fallthru
          _
        // Predicated region
        $region25: #{tpu_custom_call.1} parent=11 // pred_check
          %p209 = pneg %p129
        $region26: #{tpu_custom_call.1} parent=11 // pred_check_branch
          %211 = sbr.rel (%p209) target = $region28
        $region27: #{tpu_custom_call.1} parent=11 // pred_region
          %s213 = ssub.s32 2048, 2048
          %214 = vsyncadd [#allocation11], %s213
          %s215 = sshll.u32 [#allocation12], 4
          %s216 = int_to_ptr.vmem [resolvable:$true] %s215
          %221 = dma.hbm_to_vmem [thread:$0]  %s4, 2048, %s216, [#allocation11], 128, 128, 8
        $region28: #{tpu_custom_call.1} parent=11 // pred_fallthru
          _
      $region12: #{tpu_custom_call.1} parent=5 // pred_fallthru
        _
      %p222 = scmp.lt.s32.totalorder %s19, 2
      // Predicated region
      $region29: #{tpu_custom_call.1} parent=5 // pred_check
        %p223 = pneg %p222
      $region30: #{tpu_custom_call.1} parent=5 // pred_check_branch
        %225 = sbr.rel (%p223) target = $region32
      $region31: #{tpu_custom_call.1} parent=5 // pred_region
        // Predicated region
        $region33: #{tpu_custom_call.1} parent=31 // pred_check
          %p226 = pneg %p39
        $region34: #{tpu_custom_call.1} parent=31 // pred_check_branch
          %228 = sbr.rel (%p226) target = $region36
        $region35: #{tpu_custom_call.1} parent=31 // pred_region
          %s229 = sand.u32 %s29, 1
          %s230 = scalar_lea.sflag [#allocation5], %s229
          %s231 = sand.u32 %s29, 1
          %s232 = smul.addr %s231, 8
          %s233 = scalar_lea.vmem [#allocation4], %s232
          %s235 = ssub.s32 128, 128
          %236 = vsyncadd %s230, %s235
          %s237 = smul.addr %s19, 128
          %s238 = scalar_lea.hbm %s0, %s237
          %s240 = sshll.u32 %s233, 4
          %s241 = int_to_ptr.vmem [resolvable:$true] %s240
          %243 = dma.hbm_to_vmem [thread:$0]  %s238, 128, %s241, %s230
        $region36: #{tpu_custom_call.1} parent=31 // pred_fallthru
          _
      $region32: #{tpu_custom_call.1} parent=5 // pred_fallthru
        _
      %p244 = scmp.le.s32.totalorder 1, %s19
      %p245 = scmp.lt.s32.totalorder %s19, 3
      %p246 = pnand %p244, %p245
      %p247 = pneg %p246
      // Predicated region
      $region37: #{tpu_custom_call.1} parent=5 // pred_check
        _
      $region38: #{tpu_custom_call.1} parent=5 // pred_check_branch
        %249 = sbr.rel (%p246) target = $region40
      $region39: #{tpu_custom_call.1} parent=5 // pred_region
        %s250 = ssub.s32 %s19, 1
        %s251 = sand.u32 %s32, 1
        %s252 = scalar_lea.sflag [#allocation5], %s251
        %s253 = sand.u32 %s32, 1
        %s254 = smul.addr %s253, 8
        %s255 = scalar_lea.vmem [#allocation4], %s254
        // Predicated region
        $region41: #{tpu_custom_call.1} parent=39 // pred_check
          %p256 = pneg %p45
        $region42: #{tpu_custom_call.1} parent=39 // pred_check_branch
          %258 = sbr.rel (%p256) target = $region44
        $region43: #{tpu_custom_call.1} parent=39 // pred_region
          %259 = dma.done %s252, 128
        $region44: #{tpu_custom_call.1} parent=39 // pred_fallthru
          _
        // Predicated region
        $region45: #{tpu_custom_call.1} parent=39 // pred_check
          %p260 = pneg %p66
        $region46: #{tpu_custom_call.1} parent=39 // pred_check_branch
          %262 = sbr.rel (%p260) target = $region48
        $region47: #{tpu_custom_call.1} parent=39 // pred_region
          %263 = dma.done [#allocation8], 2048
        $region48: #{tpu_custom_call.1} parent=39 // pred_fallthru
          _
        // Predicated region
        $region49: #{tpu_custom_call.1} parent=39 // pred_check
          %p264 = pneg %p87
        $region50: #{tpu_custom_call.1} parent=39 // pred_check_branch
          %266 = sbr.rel (%p264) target = $region52
        $region51: #{tpu_custom_call.1} parent=39 // pred_region
          %267 = dma.done [#allocation8], 1024
        $region52: #{tpu_custom_call.1} parent=39 // pred_fallthru
          _
        // Predicated region
        $region53: #{tpu_custom_call.1} parent=39 // pred_check
          %p268 = pneg %p108
        $region54: #{tpu_custom_call.1} parent=39 // pred_check_branch
          %270 = sbr.rel (%p268) target = $region56
        $region55: #{tpu_custom_call.1} parent=39 // pred_region
          %271 = dma.done [#allocation11], 1024
        $region56: #{tpu_custom_call.1} parent=39 // pred_fallthru
          _
        // Predicated region
        $region57: #{tpu_custom_call.1} parent=39 // pred_check
          %p272 = pneg %p129
        $region58: #{tpu_custom_call.1} parent=39 // pred_check_branch
          %274 = sbr.rel (%p272) target = $region60
        $region59: #{tpu_custom_call.1} parent=39 // pred_region
          %275 = dma.done [#allocation11], 2048
        $region60: #{tpu_custom_call.1} parent=39 // pred_fallthru
          _
        %s276 = sand.u32 %s32, 1
        %s277 = scalar_lea.sflag [#allocation5], %s276
        %s278 = sand.u32 %s32, 1
        %s279 = smul.addr %s278, 8
        %s280 = scalar_lea.vmem [#allocation4], %s279
        %p281 = pneg %p45
        %p282 = pneg %p42
        %p283 = pneg %p66
        %p284 = pneg %p63
        %p285 = pneg %p87
        %p286 = pneg %p84
        %p287 = pneg %p108
        %p288 = pneg %p105
        %p289 = pneg %p129
        %p290 = pneg %p126
        %p291 = pneg %p155
        %p292 = pneg %p152
        %s293 = sand.u32 %s142, 1
        %s294 = scalar_lea.sflag [#allocation6], %s293
        %s295 = sand.u32 %s142, 1
        %s296 = smul.addr %s295, 8
        %s297 = scalar_lea.vmem [#allocation13], %s296
        %v298 = vld [vmem:[%s255] sm:$0xff]
        %v299 = vld [vmem:[#allocation7] sm:$0xff]
        %v300 = vld [vmem:[#allocation7 + $0x8] sm:$0xff]
        %v301 = vld [vmem:[#allocation7 + $0x10] sm:$0xff]
        %v302 = vld [vmem:[#allocation7 + $0x18] sm:$0xff]
        %v303 = vld [vmem:[#allocation7 + $0x20] sm:$0xff]
        %v304 = vld [vmem:[#allocation7 + $0x28] sm:$0xff]
        %v305 = vld [vmem:[#allocation7 + $0x30] sm:$0xff]
        %v306 = vld [vmem:[#allocation7 + $0x38] sm:$0xff]
        %v307 = vld [vmem:[#allocation7 + $0x40] sm:$0xff]
        %v308 = vld [vmem:[#allocation7 + $0x48] sm:$0xff]
        %v309 = vld [vmem:[#allocation7 + $0x50] sm:$0xff]
        %v310 = vld [vmem:[#allocation7 + $0x58] sm:$0xff]
        %v311 = vld [vmem:[#allocation7 + $0x60] sm:$0xff]
        %v312 = vld [vmem:[#allocation7 + $0x68] sm:$0xff]
        %v313 = vld [vmem:[#allocation7 + $0x70] sm:$0xff]
        %v314 = vld [vmem:[#allocation7 + $0x78] sm:$0xff]
        %315 = vmatprep.subr.mxu0 0.0
        %316 = vmatpush1.msra.mxu0 %v299
        %317 = vmatprep.subr.mxu0 0.0
        %318 = vmatpush1.msra.mxu0 %v300
        %319 = vmatprep.subr.mxu0 0.0
        %320 = vmatpush1.msra.mxu0 %v301
        %321 = vmatprep.subr.mxu0 0.0
        %322 = vmatpush1.msra.mxu0 %v302
        %323 = vmatprep.subr.mxu0 0.0
        %324 = vmatpush1.msra.mxu0 %v303
        %325 = vmatprep.subr.mxu0 0.0
        %326 = vmatpush1.msra.mxu0 %v304
        %327 = vmatprep.subr.mxu0 0.0
        %328 = vmatpush1.msra.mxu0 %v305
        %329 = vmatprep.subr.mxu0 0.0
        %330 = vmatpush1.msra.mxu0 %v306
        %331 = vmatprep.subr.mxu0 0.0
        %332 = vmatpush1.msra.mxu0 %v307
        %333 = vmatprep.subr.mxu0 0.0
        %334 = vmatpush1.msra.mxu0 %v308
        %335 = vmatprep.subr.mxu0 0.0
        %336 = vmatpush1.msra.mxu0 %v309
        %337 = vmatprep.subr.mxu0 0.0
        %338 = vmatpush1.msra.mxu0 %v310
        %339 = vmatprep.subr.mxu0 0.0
        %340 = vmatpush1.msra.mxu0 %v311
        %341 = vmatprep.subr.mxu0 0.0
        %342 = vmatpush1.msra.mxu0 %v312
        %343 = vmatprep.subr.mxu0 0.0
        %344 = vmatpush1.msra.mxu0 %v313
        %345 = vmatprep.subr.mxu0 0.0
        %346 = vmatpush1.msra.mxu0 %v314
        %347 = vmatprep.subr.mxu0 0.0
        %348 = vmatpush1.msra.mxu0 0.0
        %349 = vmatprep.subr.mxu0 0.0
        %350 = vmatpush1.msra.mxu0 0.0
        %351 = vmatprep.subr.mxu0 0.0
        %352 = vmatpush1.msra.mxu0 0.0
        %353 = vmatprep.subr.mxu0 0.0
        %354 = vmatpush1.msra.mxu0 0.0
        %355 = vmatprep.subr.mxu0 0.0
        %356 = vmatpush1.msra.mxu0 0.0
        %357 = vmatprep.subr.mxu0 0.0
        %358 = vmatpush1.msra.mxu0 0.0
        %359 = vmatprep.subr.mxu0 0.0
        %360 = vmatpush1.msra.mxu0 0.0
        %361 = vmatprep.subr.mxu0 0.0
        %362 = vmatpush1.msra.mxu0 0.0
        %363 = vmatprep.subr.mxu0 0.0
        %364 = vmatpush1.msra.mxu0 0.0
        %365 = vmatprep.subr.mxu0 0.0
        %366 = vmatpush1.msra.mxu0 0.0
        %367 = vmatprep.subr.mxu0 0.0
        %368 = vmatpush1.msra.mxu0 0.0
        %369 = vmatprep.subr.mxu0 0.0
        %370 = vmatpush1.msra.mxu0 0.0
        %371 = vmatprep.subr.mxu0 0.0
        %372 = vmatpush1.msra.mxu0 0.0
        %373 = vmatprep.subr.mxu0 0.0
        %374 = vmatpush1.msra.mxu0 0.0
        %375 = vmatprep.subr.mxu0 0.0
        %376 = vmatpush1.msra.mxu0 0.0
        %377 = vmatprep.subr.mxu0 0.0
        %378 = vmatpush1.msra.mxu0 0.0
        %379 = vmatprep.mubr.f32.mxu0 0.0
        %380 = vmatmul.mubr.f32.gmra.mrb[0].mxu0 %v298
        %v381 = vpop.f32.mrb[0].mxu0
        %v382 = vadd.f32 0.0, %v381
        %v383 = vpop.f32.mrb[0].mxu0
        %384 = vdwg.mxu0
        %385 = vst [vmem:[#allocation2] sm:$0xff] %v382
        %v386 = vld [vmem:[#allocation2] sm:$0x1]
        %v387 = vld [vmem:[#allocation9] sm:$0xff]
        %v388 = vld [vmem:[#allocation10] sm:$0xff]
        %v389 = vlaneseq
        %v390 = vshrl.u32 %v389, 7
        %v391 = vsub.s32 0, %v390
        %v392 = vrot.slane %v386, %v391
        %v393 = vmul.f32 %v392, %v387
        %v394 = vadd.f32 %v393, 0.0
        %396 = vrot.lane.b32.xlu0 %v388, 64
        %v397 = vpop.permute.xlu0 %396
        %v399 = vmul.f32 %v392, %v397
        %401 = vrot.lane.b32.xlu0 %v399, 64
        %v402 = vpop.permute.xlu0 %401
        %v404 = vsub.f32 %v394, %v402
        %v405 = vmul.f32 %v392, %v388
        %v406 = vadd.f32 %v405, 0.0
        %408 = vrot.lane.b32.xlu0 %v387, 64
        %v409 = vpop.permute.xlu0 %408
        %v411 = vmul.f32 %v392, %v409
        %413 = vrot.lane.b32.xlu0 %v411, 64
        %v414 = vpop.permute.xlu0 %413
        %v416 = vadd.f32 %v406, %v414
        %v417 = vld [vmem:[#allocation2 + $0x1] sm:$0x1]
        %s418 = scalar_lea.vmem [#allocation9], 8
        %v419 = vld [vmem:[%s418] sm:$0xff]
        %s420 = scalar_lea.vmem [#allocation10], 8
        %v421 = vld [vmem:[%s420] sm:$0xff]
        %v422 = vlaneseq
        %v423 = vshrl.u32 %v422, 7
        %v424 = vsub.s32 0, %v423
        %v425 = vrot.slane %v417, %v424
        %v426 = vmul.f32 %v425, %v419
        %v427 = vadd.f32 %v404, %v426
        %429 = vrot.lane.b32.xlu0 %v421, 64
        %v430 = vpop.permute.xlu0 %429
        %v432 = vmul.f32 %v425, %v430
        %434 = vrot.lane.b32.xlu0 %v432, 64
        %v435 = vpop.permute.xlu0 %434
        %v437 = vsub.f32 %v427, %v435
        %v438 = vmul.f32 %v425, %v421
        %v439 = vadd.f32 %v416, %v438
        %441 = vrot.lane.b32.xlu0 %v419, 64
        %v442 = vpop.permute.xlu0 %441
        %v444 = vmul.f32 %v425, %v442
        %446 = vrot.lane.b32.xlu0 %v444, 64
        %v447 = vpop.permute.xlu0 %446
        %v449 = vadd.f32 %v439, %v447
        %v450 = vld [vmem:[#allocation2 + $0x2] sm:$0x1]
        %s451 = scalar_lea.vmem [#allocation9], 16
        %v452 = vld [vmem:[%s451] sm:$0xff]
        %s453 = scalar_lea.vmem [#allocation10], 16
        %v454 = vld [vmem:[%s453] sm:$0xff]
        %v455 = vlaneseq
        %v456 = vshrl.u32 %v455, 7
        %v457 = vsub.s32 0, %v456
        %v458 = vrot.slane %v450, %v457
        %v459 = vmul.f32 %v458, %v452
        %v460 = vadd.f32 %v437, %v459
        %462 = vrot.lane.b32.xlu0 %v454, 64
        %v463 = vpop.permute.xlu0 %462
        %v465 = vmul.f32 %v458, %v463
        %467 = vrot.lane.b32.xlu0 %v465, 64
        %v468 = vpop.permute.xlu0 %467
        %v470 = vsub.f32 %v460, %v468
        %v471 = vmul.f32 %v458, %v454
        %v472 = vadd.f32 %v449, %v471
        %474 = vrot.lane.b32.xlu0 %v452, 64
        %v475 = vpop.permute.xlu0 %474
        %v477 = vmul.f32 %v458, %v475
        %479 = vrot.lane.b32.xlu0 %v477, 64
        %v480 = vpop.permute.xlu0 %479
        %v482 = vadd.f32 %v472, %v480
        %v483 = vld [vmem:[#allocation2 + $0x3] sm:$0x1]
        %s484 = scalar_lea.vmem [#allocation9], 24
        %v485 = vld [vmem:[%s484] sm:$0xff]
        %s486 = scalar_lea.vmem [#allocation10], 24
        %v487 = vld [vmem:[%s486] sm:$0xff]
        %v488 = vlaneseq
        %v489 = vshrl.u32 %v488, 7
        %v490 = vsub.s32 0, %v489
        %v491 = vrot.slane %v483, %v490
        %v492 = vmul.f32 %v491, %v485
        %v493 = vadd.f32 %v470, %v492
        %495 = vrot.lane.b32.xlu0 %v487, 64
        %v496 = vpop.permute.xlu0 %495
        %v498 = vmul.f32 %v491, %v496
        %500 = vrot.lane.b32.xlu0 %v498, 64
        %v501 = vpop.permute.xlu0 %500
        %v503 = vsub.f32 %v493, %v501
        %v504 = vmul.f32 %v491, %v487
        %v505 = vadd.f32 %v482, %v504
        %507 = vrot.lane.b32.xlu0 %v485, 64
        %v508 = vpop.permute.xlu0 %507
        %v510 = vmul.f32 %v491, %v508
        %512 = vrot.lane.b32.xlu0 %v510, 64
        %v513 = vpop.permute.xlu0 %512
        %v515 = vadd.f32 %v505, %v513
        %517 = vrot.lane.b32.xlu0 %v515, 64
        %v518 = vpop.permute.xlu0 %517
        %vm520 = vcmask 523264
        %v521 = vsel %vm520, %v503, %v518
        %522 = vst [vmem:[#allocation3] sm:$0xff] %v521
        %v523 = vld [vmem:[#allocation3] sm:$0xff]
        %v524 = vld [vmem:[#allocation12] sm:$0xff]
        %v525 = vld [vmem:[#allocation12 + $0x8] sm:$0xff]
        %v526 = vld [vmem:[#allocation12 + $0x10] sm:$0xff]
        %v527 = vld [vmem:[#allocation12 + $0x18] sm:$0xff]
        %v528 = vld [vmem:[#allocation12 + $0x20] sm:$0xff]
        %v529 = vld [vmem:[#allocation12 + $0x28] sm:$0xff]
        %v530 = vld [vmem:[#allocation12 + $0x30] sm:$0xff]
        %v531 = vld [vmem:[#allocation12 + $0x38] sm:$0xff]
        %v532 = vld [vmem:[#allocation12 + $0x40] sm:$0xff]
        %v533 = vld [vmem:[#allocation12 + $0x48] sm:$0xff]
        %v534 = vld [vmem:[#allocation12 + $0x50] sm:$0xff]
        %v535 = vld [vmem:[#allocation12 + $0x58] sm:$0xff]
        %v536 = vld [vmem:[#allocation12 + $0x60] sm:$0xff]
        %v537 = vld [vmem:[#allocation12 + $0x68] sm:$0xff]
        %v538 = vld [vmem:[#allocation12 + $0x70] sm:$0xff]
        %v539 = vld [vmem:[#allocation12 + $0x78] sm:$0xff]
        %540 = vmatprep.subr.mxu0 0.0
        %541 = vmatpush1.msra.mxu0 %v524
        %542 = vmatprep.subr.mxu0 0.0
        %543 = vmatpush1.msra.mxu0 %v525
        %544 = vmatprep.subr.mxu0 0.0
        %545 = vmatpush1.msra.mxu0 %v526
        %546 = vmatprep.subr.mxu0 0.0
        %547 = vmatpush1.msra.mxu0 %v527
        %548 = vmatprep.subr.mxu0 0.0
        %549 = vmatpush1.msra.mxu0 %v528
        %550 = vmatprep.subr.mxu0 0.0
        %551 = vmatpush1.msra.mxu0 %v529
        %552 = vmatprep.subr.mxu0 0.0
        %553 = vmatpush1.msra.mxu0 %v530
        %554 = vmatprep.subr.mxu0 0.0
        %555 = vmatpush1.msra.mxu0 %v531
        %556 = vmatprep.subr.mxu0 0.0
        %557 = vmatpush1.msra.mxu0 %v532
        %558 = vmatprep.subr.mxu0 0.0
        %559 = vmatpush1.msra.mxu0 %v533
        %560 = vmatprep.subr.mxu0 0.0
        %561 = vmatpush1.msra.mxu0 %v534
        %562 = vmatprep.subr.mxu0 0.0
        %563 = vmatpush1.msra.mxu0 %v535
        %564 = vmatprep.subr.mxu0 0.0
        %565 = vmatpush1.msra.mxu0 %v536
        %566 = vmatprep.subr.mxu0 0.0
        %567 = vmatpush1.msra.mxu0 %v537
        %568 = vmatprep.subr.mxu0 0.0
        %569 = vmatpush1.msra.mxu0 %v538
        %570 = vmatprep.subr.mxu0 0.0
        %571 = vmatpush1.msra.mxu0 %v539
        %572 = vmatprep.subr.mxu0 0.0
        %573 = vmatpush1.msra.mxu0 0.0
        %574 = vmatprep.subr.mxu0 0.0
        %575 = vmatpush1.msra.mxu0 0.0
        %576 = vmatprep.subr.mxu0 0.0
        %577 = vmatpush1.msra.mxu0 0.0
        %578 = vmatprep.subr.mxu0 0.0
        %579 = vmatpush1.msra.mxu0 0.0
        %580 = vmatprep.subr.mxu0 0.0
        %581 = vmatpush1.msra.mxu0 0.0
        %582 = vmatprep.subr.mxu0 0.0
        %583 = vmatpush1.msra.mxu0 0.0
        %584 = vmatprep.subr.mxu0 0.0
        %585 = vmatpush1.msra.mxu0 0.0
        %586 = vmatprep.subr.mxu0 0.0
        %587 = vmatpush1.msra.mxu0 0.0
        %588 = vmatprep.subr.mxu0 0.0
        %589 = vmatpush1.msra.mxu0 0.0
        %590 = vmatprep.subr.mxu0 0.0
        %591 = vmatpush1.msra.mxu0 0.0
        %592 = vmatprep.subr.mxu0 0.0
        %593 = vmatpush1.msra.mxu0 0.0
        %594 = vmatprep.subr.mxu0 0.0
        %595 = vmatpush1.msra.mxu0 0.0
        %596 = vmatprep.subr.mxu0 0.0
        %597 = vmatpush1.msra.mxu0 0.0
        %598 = vmatprep.subr.mxu0 0.0
        %599 = vmatpush1.msra.mxu0 0.0
        %600 = vmatprep.subr.mxu0 0.0
        %601 = vmatpush1.msra.mxu0 0.0
        %602 = vmatprep.subr.mxu0 0.0
        %603 = vmatpush1.msra.mxu0 0.0
        %604 = vmatprep.mubr.f32.mxu0 0.0
        %605 = vmatmul.mubr.f32.gmra.mrb[0].mxu0 %v523
        %v606 = vpop.f32.mrb[0].mxu0
        %v607 = vadd.f32 0.0, %v606
        %v608 = vpop.f32.mrb[0].mxu0
        %609 = vdwg.mxu0
        %610 = vst [vmem:[%s297] sm:$0xff] %v607
        %s611 = sand.u32 %s142, 1
        %s612 = scalar_lea.sflag [#allocation6], %s611
        %s613 = sand.u32 %s142, 1
        %s614 = smul.addr %s613, 8
        %s615 = scalar_lea.vmem [#allocation13], %s614
        // Predicated region
        $region61: #{tpu_custom_call.1} parent=39 // pred_check
          %p616 = pneg %p152
        $region62: #{tpu_custom_call.1} parent=39 // pred_check_branch
          %618 = sbr.rel (%p616) target = $region64
        $region63: #{tpu_custom_call.1} parent=39 // pred_region
          %s620 = ssub.s32 128, 128
          %621 = vsyncadd %s612, %s620
          %s622 = smul.addr %s24, 128
          %s623 = scalar_lea.hbm %s5, %s622
          %s625 = sshll.u32 %s615, 4
          %s626 = int_to_ptr.vmem [resolvable:$true] %s625
          %628 = dma.vmem_to_hbm [thread:$0]  %s626, 128, %s623, %s612
        $region64: #{tpu_custom_call.1} parent=39 // pred_fallthru
          _
      $region40: #{tpu_custom_call.1} parent=5 // pred_fallthru
        _
      %p629 = scmp.le.s32.totalorder 2, %s19
      // Predicated region
      $region65: #{tpu_custom_call.1} parent=5 // pred_check
        %p630 = pneg %p629
      $region66: #{tpu_custom_call.1} parent=5 // pred_check_branch
        %632 = sbr.rel (%p630) target = $region68
      $region67: #{tpu_custom_call.1} parent=5 // pred_region
        %s633 = ssub.s32 %s19, 2
        // Predicated region
        $region69: #{tpu_custom_call.1} parent=67 // pred_check
          %p634 = pneg %p158
        $region70: #{tpu_custom_call.1} parent=67 // pred_check_branch
          %636 = sbr.rel (%p634) target = $region72
        $region71: #{tpu_custom_call.1} parent=67 // pred_region
          %s637 = sand.u32 %s143, 1
          %s638 = scalar_lea.sflag [#allocation6], %s637
          %s639 = sand.u32 %s143, 1
          %s640 = smul.addr %s639, 8
          %s641 = scalar_lea.vmem [#allocation13], %s640
          %642 = dma.done %s638, 128
        $region72: #{tpu_custom_call.1} parent=67 // pred_fallthru
          _
      $region68: #{tpu_custom_call.1} parent=5 // pred_fallthru
        _
    $region6: #{tpu_custom_call.1} parent=1 // loop_footer
      %s23 = sadd.s32 1, %s19
    $region7: #{tpu_custom_call.1} parent=1 // loop_footer_branch
      %18 = sbr.rel target = $region3
    $region8: #{tpu_custom_call.1} parent=1 // loop_exit
      _
    %643 = vsyncpa [#allocation5], 1
    %s644 = scalar_lea.sflag [#allocation5], 1
    %645 = vsyncpa %s644, 1
    %646 = vsyncpa [#allocation8], 1
    %647 = vsyncpa [#allocation11], 1
    %648 = vsyncpa [#allocation6], 1
    %s649 = scalar_lea.sflag [#allocation6], 1
    %650 = vsyncpa %s649, 1

// kernel: tpu_custom_call.1
$region0: #{tpu_custom_call.1}
  #allocation0 [shape = 'u32[]', space=smem, size = 0x4, offset = 0x4, fixed_abs, tag = 'smem constant byte address 0x4 - core index']
  #allocation1 [shape = 'u32[144,128]{1,0:T(1,128)}', space=vmem, size = 0x12000, scoped, tag = 'internal scratch']
  #allocation2 [shape = 'f32[8,128]{1,0:T(8,128)}', space=vmem, size = 0x1000, scoped, tag = 'scratch operand']
  #allocation3 [shape = 'f32[8,128]{1,0:T(8,128)}', space=vmem, size = 0x1000, scoped, tag = 'scratch operand']
  %s0 = inlined_call_operand.hbm [shape: f32[16,128], index: 0, kind: input, shape index: {}]
  %s1 = inlined_call_operand.hbm [shape: f32[128,128], index: 1, kind: input, shape index: {}]
  %s2 = inlined_call_operand.hbm [shape: f32[8,8,64], index: 2, kind: input, shape index: {}]
  %s3 = inlined_call_operand.hbm [shape: f32[8,8,64], index: 3, kind: input, shape index: {}]
  %s4 = inlined_call_operand.hbm [shape: f32[128,128], index: 4, kind: input, shape index: {}]
  %s5 = inlined_call_operand.hbm [shape: f32[16,128], index: 5, kind: output, shape index: {}]
  %s6 = sld [smem:[#allocation0]]
  $region73: #{tpu_custom_call.1} parent=0
    _
  %s8 = ssub.s32 1, %s6
  %s9 = scalar_select 0, %s8, %s6
  $region1: #{tpu_custom_call.1} parent=0
    #allocation4 [shape = 'u8[8192]{0}', space=vmem, size = 0x2000, scoped, tag = 'input window, operand 0']
    #allocation5 [shape = 's32[2]{0}', space=sflag, size = 0x8, scoped, tag = 'scoped memory for tpu_custom_call.1']
    #allocation6 [shape = 's32[2]{0}', space=sflag, size = 0x8, scoped, tag = 'scoped memory for tpu_custom_call.1']
    #allocation7 [shape = 'u8[65536]{0}', space=vmem, size = 0x10000, scoped, tag = 'input window, operand 1, single buffered']
    #allocation8 [shape = 's32[1]{0}', space=sflag, size = 0x4, scoped, tag = 'scoped memory for tpu_custom_call.1']
    #allocation9 [shape = 'u8[32768]{0}', space=vmem, size = 0x8000, scoped, tag = 'input window, operand 2, single buffered']
    #allocation10 [shape = 'u8[32768]{0}', space=vmem, size = 0x8000, scoped, tag = 'input window, operand 3, single buffered']
    #allocation11 [shape = 's32[1]{0}', space=sflag, size = 0x4, scoped, tag = 'scoped memory for tpu_custom_call.1']
    #allocation12 [shape = 'u8[65536]{0}', space=vmem, size = 0x10000, scoped, tag = 'input window, operand 4, single buffered']
    #allocation13 [shape = 'u8[8192]{0}', space=vmem, size = 0x2000, scoped, tag = 'output window, operand 0']
    %10 = vsyncpa [#allocation5], 0
    %s11 = scalar_lea.sflag [#allocation5], 1
    %12 = vsyncpa %s11, 0
    %13 = vsyncpa [#allocation8], 0
    %14 = vsyncpa [#allocation11], 0
    %15 = vsyncpa [#allocation6], 0
    %s16 = scalar_lea.sflag [#allocation6], 1
    %17 = vsyncpa %s16, 0
    loop: start=0, step=1, limit=4
    $region2: #{tpu_custom_call.1} parent=1 // loop_pre_header
      _
    $region3: #{tpu_custom_call.1} parent=1 // loop_header
      %s19 = sphi 0, %s23
      %p20 = scmp.ge.s32.totalorder %s19, 4
      %s29 = sphi 0, %s31
      %s32 = sphi 0, %s29
      %s33 = sphi 0, %s32
      %s49 = sphi 0, %s33
      %s53 = sphi 0, %s53
      %s55 = sphi 0, %s53
      %s56 = sphi 0, %s55
      %s70 = sphi 0, %s56
      %s74 = sphi 0, %s74
      %s76 = sphi 0, %s74
      %s77 = sphi 0, %s76
      %s91 = sphi 0, %s77
      %s95 = sphi 0, %s95
      %s97 = sphi 0, %s95
      %s98 = sphi 0, %s97
      %s112 = sphi 0, %s98
      %s116 = sphi 0, %s116
      %s118 = sphi 0, %s116
      %s119 = sphi 0, %s118
      %s133 = sphi 0, %s119
      %s139 = sphi 0, %s141
      %s142 = sphi 0, %s139
      %s143 = sphi 0, %s142
      %s159 = sphi 0, %s143
    $region4: #{tpu_custom_call.1} parent=1 // loop_header_branch
      %22 = sbr.rel (%p20) target = $region8
    $region5: #{tpu_custom_call.1} parent=1 // loop_body
      %s24 = ssub.s32 %s19, 1
      %s25 = ssub.s32 %s19, 2
      %s26 = sadd.s32 %s19, 1
      %s27 = ssub.s32 %s19, %s26
      %p28 = scmp.eq.s32.totalorder %s27, 0
      %s30 = sadd.s32 %s29, 1
      %s31 = scalar_select %p28, %s29, %s30
      %p34 = pneg %p28
      %p35 = scmp.eq.s32.totalorder %s19, 1
      %p36 = por %p34, %p35
      %p37 = scmp.ne.s32.totalorder %s29, %s32
      %p38 = scmp.eq.s32.totalorder %s19, 0
      %p39 = por %p37, %p38
      %p40 = scmp.ne.s32.totalorder %s29, %s32
      %p41 = scmp.eq.s32.totalorder %s24, 1
      %p42 = por %p40, %p41
      %p43 = scmp.ne.s32.totalorder %s32, %s33
      %p44 = scmp.eq.s32.totalorder %s24, 0
      %p45 = por %p43, %p44
      %p46 = scmp.ne.s32.totalorder %s32, %s33
      %p47 = scmp.eq.s32.totalorder %s25, 1
      %p48 = por %p46, %p47
      %p50 = scmp.ne.s32.totalorder %s33, %s49
      %p51 = scmp.eq.s32.totalorder %s25, 0
      %p52 = por %p50, %p51
      %s54 = sadd.s32 %s53, 1
      %p57 = scmp.eq.s32.totalorder %s19, 1
      %p58 = scmp.ne.s32.totalorder %s53, %s55
      %p59 = scmp.eq.s32.totalorder %s19, 0
      %p60 = por %p58, %p59
      %p61 = scmp.ne.s32.totalorder %s53, %s55
      %p62 = scmp.eq.s32.totalorder %s24, 1
      %p63 = por %p61, %p62
      %p64 = scmp.ne.s32.totalorder %s55, %s56
      %p65 = scmp.eq.s32.totalorder %s24, 0
      %p66 = por %p64, %p65
      %p67 = scmp.ne.s32.totalorder %s55, %s56
      %p68 = scmp.eq.s32.totalorder %s25, 1
      %p69 = por %p67, %p68
      %p71 = scmp.ne.s32.totalorder %s56, %s70
      %p72 = scmp.eq.s32.totalorder %s25, 0
      %p73 = por %p71, %p72
      %s75 = sadd.s32 %s74, 1
      %p78 = scmp.eq.s32.totalorder %s19, 1
      %p79 = scmp.ne.s32.totalorder %s74, %s76
      %p80 = scmp.eq.s32.totalorder %s19, 0
      %p81 = por %p79, %p80
      %p82 = scmp.ne.s32.totalorder %s74, %s76
      %p83 = scmp.eq.s32.totalorder %s24, 1
      %p84 = por %p82, %p83
      %p85 = scmp.ne.s32.totalorder %s76, %s77
      %p86 = scmp.eq.s32.totalorder %s24, 0
      %p87 = por %p85, %p86
      %p88 = scmp.ne.s32.totalorder %s76, %s77
      %p89 = scmp.eq.s32.totalorder %s25, 1
      %p90 = por %p88, %p89
      %p92 = scmp.ne.s32.totalorder %s77, %s91
      %p93 = scmp.eq.s32.totalorder %s25, 0
      %p94 = por %p92, %p93
      %s96 = sadd.s32 %s95, 1
      %p99 = scmp.eq.s32.totalorder %s19, 1
      %p100 = scmp.ne.s32.totalorder %s95, %s97
      %p101 = scmp.eq.s32.totalorder %s19, 0
      %p102 = por %p100, %p101
      %p103 = scmp.ne.s32.totalorder %s95, %s97
      %p104 = scmp.eq.s32.totalorder %s24, 1
      %p105 = por %p103, %p104
      %p106 = scmp.ne.s32.totalorder %s97, %s98
      %p107 = scmp.eq.s32.totalorder %s24, 0
      %p108 = por %p106, %p107
      %p109 = scmp.ne.s32.totalorder %s97, %s98
      %p110 = scmp.eq.s32.totalorder %s25, 1
      %p111 = por %p109, %p110
      %p113 = scmp.ne.s32.totalorder %s98, %s112
      %p114 = scmp.eq.s32.totalorder %s25, 0
      %p115 = por %p113, %p114
      %s117 = sadd.s32 %s116, 1
      %p120 = scmp.eq.s32.totalorder %s19, 1
      %p121 = scmp.ne.s32.totalorder %s116, %s118
      %p122 = scmp.eq.s32.totalorder %s19, 0
      %p123 = por %p121, %p122
      %p124 = scmp.ne.s32.totalorder %s116, %s118
      %p125 = scmp.eq.s32.totalorder %s24, 1
      %p126 = por %p124, %p125
      %p127 = scmp.ne.s32.totalorder %s118, %s119
      %p128 = scmp.eq.s32.totalorder %s24, 0
      %p129 = por %p127, %p128
      %p130 = scmp.ne.s32.totalorder %s118, %s119
      %p131 = scmp.eq.s32.totalorder %s25, 1
      %p132 = por %p130, %p131
      %p134 = scmp.ne.s32.totalorder %s119, %s133
      %p135 = scmp.eq.s32.totalorder %s25, 0
      %p136 = por %p134, %p135
      %s137 = ssub.s32 %s19, %s26
      %p138 = scmp.eq.s32.totalorder %s137, 0
      %s140 = sadd.s32 %s139, 1
      %s141 = scalar_select %p138, %s139, %s140
      %p144 = pneg %p138
      %p145 = scmp.eq.s32.totalorder %s19, 1
      %p146 = por %p144, %p145
      %p147 = scmp.ne.s32.totalorder %s139, %s142
      %p148 = scmp.eq.s32.totalorder %s19, 0
      %p149 = por %p147, %p148
      %p150 = scmp.ne.s32.totalorder %s139, %s142
      %p151 = scmp.eq.s32.totalorder %s24, 1
      %p152 = por %p150, %p151
      %p153 = scmp.ne.s32.totalorder %s142, %s143
      %p154 = scmp.eq.s32.totalorder %s24, 0
      %p155 = por %p153, %p154
      %p156 = scmp.ne.s32.totalorder %s142, %s143
      %p157 = scmp.eq.s32.totalorder %s25, 1
      %p158 = por %p156, %p157
      %p160 = scmp.ne.s32.totalorder %s143, %s159
      %p161 = scmp.eq.s32.totalorder %s25, 0
      %p162 = por %p160, %p161
      %p163 = scmp.le.s32.totalorder 1, %s19
      %p164 = scmp.lt.s32.totalorder %s19, 3
      %p165 = pnand %p163, %p164
      %p166 = pneg %p165
      // Predicated region
      $region9: #{tpu_custom_call.1} parent=5 // pred_check
        _
      $region10: #{tpu_custom_call.1} parent=5 // pred_check_branch
        %168 = sbr.rel (%p165) target = $region12
      $region11: #{tpu_custom_call.1} parent=5 // pred_region
        %s169 = ssub.s32 %s19, 1
        // Predicated region
        $region13: #{tpu_custom_call.1} parent=11 // pred_check
          %p170 = pneg %p66
        $region14: #{tpu_custom_call.1} parent=11 // pred_check_branch
          %172 = sbr.rel (%p170) target = $region16
        $region15: #{tpu_custom_call.1} parent=11 // pred_region
          %s174 = ssub.s32 2048, 2048
          %175 = vsyncadd [#allocation8], %s174
          %s176 = sshll.u32 [#allocation7], 4
          %s177 = int_to_ptr.vmem [resolvable:$true] %s176
          %182 = dma.hbm_to_vmem [thread:$0]  %s1, 2048, %s177, [#allocation8], 128, 128, 8
        $region16: #{tpu_custom_call.1} parent=11 // pred_fallthru
          _
        // Predicated region
        $region17: #{tpu_custom_call.1} parent=11 // pred_check
          %p183 = pneg %p87
        $region18: #{tpu_custom_call.1} parent=11 // pred_check_branch
          %185 = sbr.rel (%p183) target = $region20
        $region19: #{tpu_custom_call.1} parent=11 // pred_region
          %s187 = ssub.s32 1024, 1024
          %188 = vsyncadd [#allocation8], %s187
          %s189 = sshll.u32 [#allocation9], 4
          %s190 = int_to_ptr.vmem [resolvable:$true] %s189
          %195 = dma.hbm_to_vmem [thread:$0]  %s2, 1024, %s190, [#allocation8], 128, 128, 8
        $region20: #{tpu_custom_call.1} parent=11 // pred_fallthru
          _
        // Predicated region
        $region21: #{tpu_custom_call.1} parent=11 // pred_check
          %p196 = pneg %p108
        $region22: #{tpu_custom_call.1} parent=11 // pred_check_branch
          %198 = sbr.rel (%p196) target = $region24
        $region23: #{tpu_custom_call.1} parent=11 // pred_region
          %s200 = ssub.s32 1024, 1024
          %201 = vsyncadd [#allocation11], %s200
          %s202 = sshll.u32 [#allocation10], 4
          %s203 = int_to_ptr.vmem [resolvable:$true] %s202
          %208 = dma.hbm_to_vmem [thread:$0]  %s3, 1024, %s203, [#allocation11], 128, 128, 8
        $region24: #{tpu_custom_call.1} parent=11 // pred_fallthru
          _
        // Predicated region
        $region25: #{tpu_custom_call.1} parent=11 // pred_check
          %p209 = pneg %p129
        $region26: #{tpu_custom_call.1} parent=11 // pred_check_branch
          %211 = sbr.rel (%p209) target = $region28
        $region27: #{tpu_custom_call.1} parent=11 // pred_region
          %s213 = ssub.s32 2048, 2048
          %214 = vsyncadd [#allocation11], %s213
          %s215 = sshll.u32 [#allocation12], 4
          %s216 = int_to_ptr.vmem [resolvable:$true] %s215
          %221 = dma.hbm_to_vmem [thread:$0]  %s4, 2048, %s216, [#allocation11], 128, 128, 8
        $region28: #{tpu_custom_call.1} parent=11 // pred_fallthru
          _
      $region12: #{tpu_custom_call.1} parent=5 // pred_fallthru
        _
      %p222 = scmp.lt.s32.totalorder %s19, 2
      // Predicated region
      $region29: #{tpu_custom_call.1} parent=5 // pred_check
        %p223 = pneg %p222
      $region30: #{tpu_custom_call.1} parent=5 // pred_check_branch
        %225 = sbr.rel (%p223) target = $region32
      $region31: #{tpu_custom_call.1} parent=5 // pred_region
        // Predicated region
        $region33: #{tpu_custom_call.1} parent=31 // pred_check
          %p226 = pneg %p39
        $region34: #{tpu_custom_call.1} parent=31 // pred_check_branch
          %228 = sbr.rel (%p226) target = $region36
        $region35: #{tpu_custom_call.1} parent=31 // pred_region
          %s229 = sand.u32 %s29, 1
          %s230 = scalar_lea.sflag [#allocation5], %s229
          %s231 = sand.u32 %s29, 1
          %s232 = smul.addr %s231, 8
          %s233 = scalar_lea.vmem [#allocation4], %s232
          %s235 = ssub.s32 128, 128
          %236 = vsyncadd %s230, %s235
          %s237 = smul.addr %s19, 128
          %s238 = scalar_lea.hbm %s0, %s237
          %s240 = sshll.u32 %s233, 4
          %s241 = int_to_ptr.vmem [resolvable:$true] %s240
          %243 = dma.hbm_to_vmem [thread:$0]  %s238, 128, %s241, %s230
        $region36: #{tpu_custom_call.1} parent=31 // pred_fallthru
          _
      $region32: #{tpu_custom_call.1} parent=5 // pred_fallthru
        _
      %p244 = scmp.le.s32.totalorder 1, %s19
      %p245 = scmp.lt.s32.totalorder %s19, 3
      %p246 = pnand %p244, %p245
      %p247 = pneg %p246
      // Predicated region
      $region37: #{tpu_custom_call.1} parent=5 // pred_check
        _
      $region38: #{tpu_custom_call.1} parent=5 // pred_check_branch
        %249 = sbr.rel (%p246) target = $region40
      $region39: #{tpu_custom_call.1} parent=5 // pred_region
        %s250 = ssub.s32 %s19, 1
        %s251 = sand.u32 %s32, 1
        %s252 = scalar_lea.sflag [#allocation5], %s251
        %s253 = sand.u32 %s32, 1
        %s254 = smul.addr %s253, 8
        %s255 = scalar_lea.vmem [#allocation4], %s254
        // Predicated region
        $region41: #{tpu_custom_call.1} parent=39 // pred_check
          %p256 = pneg %p45
        $region42: #{tpu_custom_call.1} parent=39 // pred_check_branch
          %258 = sbr.rel (%p256) target = $region44
        $region43: #{tpu_custom_call.1} parent=39 // pred_region
          %259 = dma.done %s252, 128
        $region44: #{tpu_custom_call.1} parent=39 // pred_fallthru
          _
        // Predicated region
        $region45: #{tpu_custom_call.1} parent=39 // pred_check
          %p260 = pneg %p66
        $region46: #{tpu_custom_call.1} parent=39 // pred_check_branch
          %262 = sbr.rel (%p260) target = $region48
        $region47: #{tpu_custom_call.1} parent=39 // pred_region
          %263 = dma.done [#allocation8], 2048
        $region48: #{tpu_custom_call.1} parent=39 // pred_fallthru
          _
        // Predicated region
        $region49: #{tpu_custom_call.1} parent=39 // pred_check
          %p264 = pneg %p87
        $region50: #{tpu_custom_call.1} parent=39 // pred_check_branch
          %266 = sbr.rel (%p264) target = $region52
        $region51: #{tpu_custom_call.1} parent=39 // pred_region
          %267 = dma.done [#allocation8], 1024
        $region52: #{tpu_custom_call.1} parent=39 // pred_fallthru
          _
        // Predicated region
        $region53: #{tpu_custom_call.1} parent=39 // pred_check
          %p268 = pneg %p108
        $region54: #{tpu_custom_call.1} parent=39 // pred_check_branch
          %270 = sbr.rel (%p268) target = $region56
        $region55: #{tpu_custom_call.1} parent=39 // pred_region
          %271 = dma.done [#allocation11], 1024
        $region56: #{tpu_custom_call.1} parent=39 // pred_fallthru
          _
        // Predicated region
        $region57: #{tpu_custom_call.1} parent=39 // pred_check
          %p272 = pneg %p129
        $region58: #{tpu_custom_call.1} parent=39 // pred_check_branch
          %274 = sbr.rel (%p272) target = $region60
        $region59: #{tpu_custom_call.1} parent=39 // pred_region
          %275 = dma.done [#allocation11], 2048
        $region60: #{tpu_custom_call.1} parent=39 // pred_fallthru
          _
        %s276 = sand.u32 %s32, 1
        %s277 = scalar_lea.sflag [#allocation5], %s276
        %s278 = sand.u32 %s32, 1
        %s279 = smul.addr %s278, 8
        %s280 = scalar_lea.vmem [#allocation4], %s279
        %p281 = pneg %p45
        %p282 = pneg %p42
        %p283 = pneg %p66
        %p284 = pneg %p63
        %p285 = pneg %p87
        %p286 = pneg %p84
        %p287 = pneg %p108
        %p288 = pneg %p105
        %p289 = pneg %p129
        %p290 = pneg %p126
        %p291 = pneg %p155
        %p292 = pneg %p152
        %s293 = sand.u32 %s142, 1
        %s294 = scalar_lea.sflag [#allocation6], %s293
        %s295 = sand.u32 %s142, 1
        %s296 = smul.addr %s295, 8
        %s297 = scalar_lea.vmem [#allocation13], %s296
        %v298 = vld [vmem:[%s255] sm:$0xff]
        %v299 = vld [vmem:[#allocation7] sm:$0xff]
        %v300 = vld [vmem:[#allocation7 + $0x8] sm:$0xff]
        %v301 = vld [vmem:[#allocation7 + $0x10] sm:$0xff]
        %v302 = vld [vmem:[#allocation7 + $0x18] sm:$0xff]
        %v303 = vld [vmem:[#allocation7 + $0x20] sm:$0xff]
        %v304 = vld [vmem:[#allocation7 + $0x28] sm:$0xff]
        %v305 = vld [vmem:[#allocation7 + $0x30] sm:$0xff]
        %v306 = vld [vmem:[#allocation7 + $0x38] sm:$0xff]
        %v307 = vld [vmem:[#allocation7 + $0x40] sm:$0xff]
        %v308 = vld [vmem:[#allocation7 + $0x48] sm:$0xff]
        %v309 = vld [vmem:[#allocation7 + $0x50] sm:$0xff]
        %v310 = vld [vmem:[#allocation7 + $0x58] sm:$0xff]
        %v311 = vld [vmem:[#allocation7 + $0x60] sm:$0xff]
        %v312 = vld [vmem:[#allocation7 + $0x68] sm:$0xff]
        %v313 = vld [vmem:[#allocation7 + $0x70] sm:$0xff]
        %v314 = vld [vmem:[#allocation7 + $0x78] sm:$0xff]
        %315 = vmatprep.subr.mxu0 0.0
        %316 = vmatpush1.msra.mxu0 %v299
        %317 = vmatprep.subr.mxu0 0.0
        %318 = vmatpush1.msra.mxu0 %v300
        %319 = vmatprep.subr.mxu0 0.0
        %320 = vmatpush1.msra.mxu0 %v301
        %321 = vmatprep.subr.mxu0 0.0
        %322 = vmatpush1.msra.mxu0 %v302
        %323 = vmatprep.subr.mxu0 0.0
        %324 = vmatpush1.msra.mxu0 %v303
        %325 = vmatprep.subr.mxu0 0.0
        %326 = vmatpush1.msra.mxu0 %v304
        %327 = vmatprep.subr.mxu0 0.0
        %328 = vmatpush1.msra.mxu0 %v305
        %329 = vmatprep.subr.mxu0 0.0
        %330 = vmatpush1.msra.mxu0 %v306
        %331 = vmatprep.subr.mxu0 0.0
        %332 = vmatpush1.msra.mxu0 %v307
        %333 = vmatprep.subr.mxu0 0.0
        %334 = vmatpush1.msra.mxu0 %v308
        %335 = vmatprep.subr.mxu0 0.0
        %336 = vmatpush1.msra.mxu0 %v309
        %337 = vmatprep.subr.mxu0 0.0
        %338 = vmatpush1.msra.mxu0 %v310
        %339 = vmatprep.subr.mxu0 0.0
        %340 = vmatpush1.msra.mxu0 %v311
        %341 = vmatprep.subr.mxu0 0.0
        %342 = vmatpush1.msra.mxu0 %v312
        %343 = vmatprep.subr.mxu0 0.0
        %344 = vmatpush1.msra.mxu0 %v313
        %345 = vmatprep.subr.mxu0 0.0
        %346 = vmatpush1.msra.mxu0 %v314
        %347 = vmatprep.subr.mxu0 0.0
        %348 = vmatpush1.msra.mxu0 0.0
        %349 = vmatprep.subr.mxu0 0.0
        %350 = vmatpush1.msra.mxu0 0.0
        %351 = vmatprep.subr.mxu0 0.0
        %352 = vmatpush1.msra.mxu0 0.0
        %353 = vmatprep.subr.mxu0 0.0
        %354 = vmatpush1.msra.mxu0 0.0
        %355 = vmatprep.subr.mxu0 0.0
        %356 = vmatpush1.msra.mxu0 0.0
        %357 = vmatprep.subr.mxu0 0.0
        %358 = vmatpush1.msra.mxu0 0.0
        %359 = vmatprep.subr.mxu0 0.0
        %360 = vmatpush1.msra.mxu0 0.0
        %361 = vmatprep.subr.mxu0 0.0
        %362 = vmatpush1.msra.mxu0 0.0
        %363 = vmatprep.subr.mxu0 0.0
        %364 = vmatpush1.msra.mxu0 0.0
        %365 = vmatprep.subr.mxu0 0.0
        %366 = vmatpush1.msra.mxu0 0.0
        %367 = vmatprep.subr.mxu0 0.0
        %368 = vmatpush1.msra.mxu0 0.0
        %369 = vmatprep.subr.mxu0 0.0
        %370 = vmatpush1.msra.mxu0 0.0
        %371 = vmatprep.subr.mxu0 0.0
        %372 = vmatpush1.msra.mxu0 0.0
        %373 = vmatprep.subr.mxu0 0.0
        %374 = vmatpush1.msra.mxu0 0.0
        %375 = vmatprep.subr.mxu0 0.0
        %376 = vmatpush1.msra.mxu0 0.0
        %377 = vmatprep.subr.mxu0 0.0
        %378 = vmatpush1.msra.mxu0 0.0
        %379 = vmatprep.mubr.f32.mxu0 0.0
        %380 = vmatmul.mubr.f32.gmra.mrb[0].mxu0 %v298
        %v381 = vpop.f32.mrb[0].mxu0
        %v382 = vadd.f32 0.0, %v381
        %v383 = vpop.f32.mrb[0].mxu0
        %384 = vdwg.mxu0
        %385 = vst [vmem:[#allocation2] sm:$0xff] %v382
        %v386 = vld [vmem:[#allocation2] sm:$0x1]
        %v387 = vld [vmem:[#allocation9] sm:$0xff]
        %v388 = vld [vmem:[#allocation10] sm:$0xff]
        %v389 = vlaneseq
        %v390 = vshrl.u32 %v389, 7
        %v391 = vsub.s32 0, %v390
        %v392 = vrot.slane %v386, %v391
        %v393 = vmul.f32 %v392, %v387
        %v394 = vadd.f32 %v393, 0.0
        %396 = vrot.lane.b32.xlu0 %v388, 64
        %v397 = vpop.permute.xlu0 %396
        %v399 = vmul.f32 %v392, %v397
        %401 = vrot.lane.b32.xlu0 %v399, 64
        %v402 = vpop.permute.xlu0 %401
        %v404 = vsub.f32 %v394, %v402
        %v405 = vmul.f32 %v392, %v388
        %v406 = vadd.f32 %v405, 0.0
        %408 = vrot.lane.b32.xlu0 %v387, 64
        %v409 = vpop.permute.xlu0 %408
        %v411 = vmul.f32 %v392, %v409
        %413 = vrot.lane.b32.xlu0 %v411, 64
        %v414 = vpop.permute.xlu0 %413
        %v416 = vadd.f32 %v406, %v414
        %v417 = vld [vmem:[#allocation2 + $0x1] sm:$0x1]
        %s418 = scalar_lea.vmem [#allocation9], 8
        %v419 = vld [vmem:[%s418] sm:$0xff]
        %s420 = scalar_lea.vmem [#allocation10], 8
        %v421 = vld [vmem:[%s420] sm:$0xff]
        %v422 = vlaneseq
        %v423 = vshrl.u32 %v422, 7
        %v424 = vsub.s32 0, %v423
        %v425 = vrot.slane %v417, %v424
        %v426 = vmul.f32 %v425, %v419
        %v427 = vadd.f32 %v404, %v426
        %429 = vrot.lane.b32.xlu0 %v421, 64
        %v430 = vpop.permute.xlu0 %429
        %v432 = vmul.f32 %v425, %v430
        %434 = vrot.lane.b32.xlu0 %v432, 64
        %v435 = vpop.permute.xlu0 %434
        %v437 = vsub.f32 %v427, %v435
        %v438 = vmul.f32 %v425, %v421
        %v439 = vadd.f32 %v416, %v438
        %441 = vrot.lane.b32.xlu0 %v419, 64
        %v442 = vpop.permute.xlu0 %441
        %v444 = vmul.f32 %v425, %v442
        %446 = vrot.lane.b32.xlu0 %v444, 64
        %v447 = vpop.permute.xlu0 %446
        %v449 = vadd.f32 %v439, %v447
        %v450 = vld [vmem:[#allocation2 + $0x2] sm:$0x1]
        %s451 = scalar_lea.vmem [#allocation9], 16
        %v452 = vld [vmem:[%s451] sm:$0xff]
        %s453 = scalar_lea.vmem [#allocation10], 16
        %v454 = vld [vmem:[%s453] sm:$0xff]
        %v455 = vlaneseq
        %v456 = vshrl.u32 %v455, 7
        %v457 = vsub.s32 0, %v456
        %v458 = vrot.slane %v450, %v457
        %v459 = vmul.f32 %v458, %v452
        %v460 = vadd.f32 %v437, %v459
        %462 = vrot.lane.b32.xlu0 %v454, 64
        %v463 = vpop.permute.xlu0 %462
        %v465 = vmul.f32 %v458, %v463
        %467 = vrot.lane.b32.xlu0 %v465, 64
        %v468 = vpop.permute.xlu0 %467
        %v470 = vsub.f32 %v460, %v468
        %v471 = vmul.f32 %v458, %v454
        %v472 = vadd.f32 %v449, %v471
        %474 = vrot.lane.b32.xlu0 %v452, 64
        %v475 = vpop.permute.xlu0 %474
        %v477 = vmul.f32 %v458, %v475
        %479 = vrot.lane.b32.xlu0 %v477, 64
        %v480 = vpop.permute.xlu0 %479
        %v482 = vadd.f32 %v472, %v480
        %v483 = vld [vmem:[#allocation2 + $0x3] sm:$0x1]
        %s484 = scalar_lea.vmem [#allocation9], 24
        %v485 = vld [vmem:[%s484] sm:$0xff]
        %s486 = scalar_lea.vmem [#allocation10], 24
        %v487 = vld [vmem:[%s486] sm:$0xff]
        %v488 = vlaneseq
        %v489 = vshrl.u32 %v488, 7
        %v490 = vsub.s32 0, %v489
        %v491 = vrot.slane %v483, %v490
        %v492 = vmul.f32 %v491, %v485
        %v493 = vadd.f32 %v470, %v492
        %495 = vrot.lane.b32.xlu0 %v487, 64
        %v496 = vpop.permute.xlu0 %495
        %v498 = vmul.f32 %v491, %v496
        %500 = vrot.lane.b32.xlu0 %v498, 64
        %v501 = vpop.permute.xlu0 %500
        %v503 = vsub.f32 %v493, %v501
        %v504 = vmul.f32 %v491, %v487
        %v505 = vadd.f32 %v482, %v504
        %507 = vrot.lane.b32.xlu0 %v485, 64
        %v508 = vpop.permute.xlu0 %507
        %v510 = vmul.f32 %v491, %v508
        %512 = vrot.lane.b32.xlu0 %v510, 64
        %v513 = vpop.permute.xlu0 %512
        %v515 = vadd.f32 %v505, %v513
        %517 = vrot.lane.b32.xlu0 %v515, 64
        %v518 = vpop.permute.xlu0 %517
        %vm520 = vcmask 523264
        %v521 = vsel %vm520, %v503, %v518
        %522 = vst [vmem:[#allocation3] sm:$0xff] %v521
        %v523 = vld [vmem:[#allocation3] sm:$0xff]
        %v524 = vld [vmem:[#allocation12] sm:$0xff]
        %v525 = vld [vmem:[#allocation12 + $0x8] sm:$0xff]
        %v526 = vld [vmem:[#allocation12 + $0x10] sm:$0xff]
        %v527 = vld [vmem:[#allocation12 + $0x18] sm:$0xff]
        %v528 = vld [vmem:[#allocation12 + $0x20] sm:$0xff]
        %v529 = vld [vmem:[#allocation12 + $0x28] sm:$0xff]
        %v530 = vld [vmem:[#allocation12 + $0x30] sm:$0xff]
        %v531 = vld [vmem:[#allocation12 + $0x38] sm:$0xff]
        %v532 = vld [vmem:[#allocation12 + $0x40] sm:$0xff]
        %v533 = vld [vmem:[#allocation12 + $0x48] sm:$0xff]
        %v534 = vld [vmem:[#allocation12 + $0x50] sm:$0xff]
        %v535 = vld [vmem:[#allocation12 + $0x58] sm:$0xff]
        %v536 = vld [vmem:[#allocation12 + $0x60] sm:$0xff]
        %v537 = vld [vmem:[#allocation12 + $0x68] sm:$0xff]
        %v538 = vld [vmem:[#allocation12 + $0x70] sm:$0xff]
        %v539 = vld [vmem:[#allocation12 + $0x78] sm:$0xff]
        %540 = vmatprep.subr.mxu0 0.0
        %541 = vmatpush1.msra.mxu0 %v524
        %542 = vmatprep.subr.mxu0 0.0
        %543 = vmatpush1.msra.mxu0 %v525
        %544 = vmatprep.subr.mxu0 0.0
        %545 = vmatpush1.msra.mxu0 %v526
        %546 = vmatprep.subr.mxu0 0.0
        %547 = vmatpush1.msra.mxu0 %v527
        %548 = vmatprep.subr.mxu0 0.0
        %549 = vmatpush1.msra.mxu0 %v528
        %550 = vmatprep.subr.mxu0 0.0
        %551 = vmatpush1.msra.mxu0 %v529
        %552 = vmatprep.subr.mxu0 0.0
        %553 = vmatpush1.msra.mxu0 %v530
        %554 = vmatprep.subr.mxu0 0.0
        %555 = vmatpush1.msra.mxu0 %v531
        %556 = vmatprep.subr.mxu0 0.0
        %557 = vmatpush1.msra.mxu0 %v532
        %558 = vmatprep.subr.mxu0 0.0
        %559 = vmatpush1.msra.mxu0 %v533
        %560 = vmatprep.subr.mxu0 0.0
        %561 = vmatpush1.msra.mxu0 %v534
        %562 = vmatprep.subr.mxu0 0.0
        %563 = vmatpush1.msra.mxu0 %v535
        %564 = vmatprep.subr.mxu0 0.0
        %565 = vmatpush1.msra.mxu0 %v536
        %566 = vmatprep.subr.mxu0 0.0
        %567 = vmatpush1.msra.mxu0 %v537
        %568 = vmatprep.subr.mxu0 0.0
        %569 = vmatpush1.msra.mxu0 %v538
        %570 = vmatprep.subr.mxu0 0.0
        %571 = vmatpush1.msra.mxu0 %v539
        %572 = vmatprep.subr.mxu0 0.0
        %573 = vmatpush1.msra.mxu0 0.0
        %574 = vmatprep.subr.mxu0 0.0
        %575 = vmatpush1.msra.mxu0 0.0
        %576 = vmatprep.subr.mxu0 0.0
        %577 = vmatpush1.msra.mxu0 0.0
        %578 = vmatprep.subr.mxu0 0.0
        %579 = vmatpush1.msra.mxu0 0.0
        %580 = vmatprep.subr.mxu0 0.0
        %581 = vmatpush1.msra.mxu0 0.0
        %582 = vmatprep.subr.mxu0 0.0
        %583 = vmatpush1.msra.mxu0 0.0
        %584 = vmatprep.subr.mxu0 0.0
        %585 = vmatpush1.msra.mxu0 0.0
        %586 = vmatprep.subr.mxu0 0.0
        %587 = vmatpush1.msra.mxu0 0.0
        %588 = vmatprep.subr.mxu0 0.0
        %589 = vmatpush1.msra.mxu0 0.0
        %590 = vmatprep.subr.mxu0 0.0
        %591 = vmatpush1.msra.mxu0 0.0
        %592 = vmatprep.subr.mxu0 0.0
        %593 = vmatpush1.msra.mxu0 0.0
        %594 = vmatprep.subr.mxu0 0.0
        %595 = vmatpush1.msra.mxu0 0.0
        %596 = vmatprep.subr.mxu0 0.0
        %597 = vmatpush1.msra.mxu0 0.0
        %598 = vmatprep.subr.mxu0 0.0
        %599 = vmatpush1.msra.mxu0 0.0
        %600 = vmatprep.subr.mxu0 0.0
        %601 = vmatpush1.msra.mxu0 0.0
        %602 = vmatprep.subr.mxu0 0.0
        %603 = vmatpush1.msra.mxu0 0.0
        %604 = vmatprep.mubr.f32.mxu0 0.0
        %605 = vmatmul.mubr.f32.gmra.mrb[0].mxu0 %v523
        %v606 = vpop.f32.mrb[0].mxu0
        %v607 = vadd.f32 0.0, %v606
        %v608 = vpop.f32.mrb[0].mxu0
        %609 = vdwg.mxu0
        %610 = vst [vmem:[%s297] sm:$0xff] %v607
        %s611 = sand.u32 %s142, 1
        %s612 = scalar_lea.sflag [#allocation6], %s611
        %s613 = sand.u32 %s142, 1
        %s614 = smul.addr %s613, 8
        %s615 = scalar_lea.vmem [#allocation13], %s614
        // Predicated region
        $region61: #{tpu_custom_call.1} parent=39 // pred_check
          %p616 = pneg %p152
        $region62: #{tpu_custom_call.1} parent=39 // pred_check_branch
          %618 = sbr.rel (%p616) target = $region64
        $region63: #{tpu_custom_call.1} parent=39 // pred_region
          %s620 = ssub.s32 128, 128
          %621 = vsyncadd %s612, %s620
          %s622 = smul.addr %s24, 128
          %s623 = scalar_lea.hbm %s5, %s622
          %s625 = sshll.u32 %s615, 4
          %s626 = int_to_ptr.vmem [resolvable:$true] %s625
          %628 = dma.vmem_to_hbm [thread:$0]  %s626, 128, %s623, %s612
        $region64: #{tpu_custom_call.1} parent=39 // pred_fallthru
          _
      $region40: #{tpu_custom_call.1} parent=5 // pred_fallthru
        _
      %p629 = scmp.le.s32.totalorder 2, %s19
      // Predicated region
      $region65: #{tpu_custom_call.1} parent=5 // pred_check
        %p630 = pneg %p629
      $region66: #{tpu_custom_call.1} parent=5 // pred_check_branch
        %632 = sbr.rel (%p630) target = $region68
      $region67: #{tpu_custom_call.1} parent=5 // pred_region
        %s633 = ssub.s32 %s19, 2
        // Predicated region
        $region69: #{tpu_custom_call.1} parent=67 // pred_check
          %p634 = pneg %p158
        $region70: #{tpu_custom_call.1} parent=67 // pred_check_branch
          %636 = sbr.rel (%p634) target = $region72
        $region71: #{tpu_custom_call.1} parent=67 // pred_region
          %s637 = sand.u32 %s143, 1
          %s638 = scalar_lea.sflag [#allocation6], %s637
          %s639 = sand.u32 %s143, 1
          %s640 = smul.addr %s639, 8
          %s641 = scalar_lea.vmem [#allocation13], %s640
          %642 = dma.done %s638, 128
        $region72: #{tpu_custom_call.1} parent=67 // pred_fallthru
          _
      $region68: #{tpu_custom_call.1} parent=5 // pred_fallthru
        _
    $region6: #{tpu_custom_call.1} parent=1 // loop_footer
      %s23 = sadd.s32 1, %s19
    $region7: #{tpu_custom_call.1} parent=1 // loop_footer_branch
      %18 = sbr.rel target = $region3
    $region8: #{tpu_custom_call.1} parent=1 // loop_exit
      _
    %643 = vsyncpa [#allocation5], 1
    %s644 = scalar_lea.sflag [#allocation5], 1
    %645 = vsyncpa %s644, 1
    %646 = vsyncpa [#allocation8], 1
    %647 = vsyncpa [#allocation11], 1
    %648 = vsyncpa [#allocation6], 1
    %s649 = scalar_lea.sflag [#allocation6], 1
    %650 = vsyncpa %s649, 1

</llo_original>
